<compile_context>
chip_gen: v7x
topology: tpu7x:2x2x1
jax: 0.10.0
libtpu: 0.0.40
codegen_flags: <defaults>
</compile_context>

<pallas_src>
import math
from functools import partial

import jax
import jax.numpy as jnp
from jax.experimental import pallas as pl
from jax.experimental.pallas import tpu as pltpu

_MXU_DTYPE = jnp.bfloat16        # matmul operand dtype (accumulation stays f32)


def _vmem_budget():
    """Generation-aware scoped-VMEM budget (~48 MiB on v7x, up to ~96 MiB on v5e/v6e)."""
    cap = 64 * 1024 * 1024
    try:
        cap = int(getattr(pltpu.get_tpu_info(), "vmem_capacity_bytes", cap))
    except Exception:
        pass
    return int(min(cap * 3 // 4, 96 * 1024 * 1024))


def _cparams(vmem_limit, *sem):
    return pltpu.CompilerParams(dimension_semantics=sem,
                                vmem_limit_bytes=int(vmem_limit))


def _pick_tile(n_rows, per_row_bytes, vmem_bytes, frac=3):
    """Largest row tile (multiple of 8, <= 2048) whose working set fits ~vmem/frac."""
    t = (vmem_bytes // frac) // max(per_row_bytes, 1)
    t = min(t, 2048)
    t = max((t // 8) * 8, 8)
    return n_rows if n_rows <= t else t


# ---------------- kernel A: fused fc1 (VPU FMAs) + wide q/k/v GEMM ----------------

def _fc1_qkv_kernel(f_ref, fw_ref, fb_ref, wcat_ref, x_ref, qkv_ref):
    # f: (1, tn, d_points); fw: (d_points, C); fb: (1, C); wcat: (1, C, 3F) bf16
    d_points = f_ref.shape[-1]
    feat = f_ref[0].astype(jnp.float32)                      # (tn, d_points)
    fw = fw_ref[...]
    x = fb_ref[...]                                          # (1, C) -> broadcasts
    for c in range(d_points):                                # contraction dim tiny:
        x = x + feat[:, c:c + 1] * fw[c:c + 1, :]            # VPU FMAs, no padded MXU matmul
    x_ref[0] = x.astype(x_ref.dtype)
    qkv_ref[0] = jnp.dot(x.astype(_MXU_DTYPE), wcat_ref[0],
                         preferred_element_type=jnp.float32).astype(qkv_ref.dtype)


def fc1_qkv_pallas(features, fc1_w, fc1_b, wcat, tn, vmem):
    B, N, d_points = features.shape
    C = fc1_w.shape[1]
    F3 = wcat.shape[-1]
    return pl.pallas_call(
        _fc1_qkv_kernel,
        out_shape=(jax.ShapeDtypeStruct((B, N, C), jnp.float32),
                   jax.ShapeDtypeStruct((B, N, F3), jnp.float32)),
        grid=(B, pl.cdiv(N, tn)),
        in_specs=[pl.BlockSpec((1, tn, d_points), lambda b, n: (b, n, 0)),
                  pl.BlockSpec((d_points, C), lambda b, n: (0, 0)),
                  pl.BlockSpec((1, C), lambda b, n: (0, 0)),
                  pl.BlockSpec((1, C, F3), lambda b, n: (b, 0, 0))],
        out_specs=(pl.BlockSpec((1, tn, C), lambda b, n: (b, n, 0)),
                   pl.BlockSpec((1, tn, F3), lambda b, n: (b, n, 0))),
        compiler_params=_cparams(vmem, "parallel", "parallel"),
    )(features, fc1_w, fc1_b, wcat)


# ---- kernel B: fused fc_delta -> fc_gamma -> L1 normalization -> weighted sum ----

def _attn_fused_kernel(qx_ref, g_ref, db1_ref, dw2_ref, db2_ref,
                       gw1_ref, gb1_ref, gw2_ref, gb2_ref,
                       attn_ref, res_ref):
    _, tn, K, F3 = g_ref.shape
    F = F3 // 3
    M = tn * K

    qx = qx_ref[0]                                           # (tn, 2F) f32
    q, xp = qx[:, :F], qx[:, F:]
    g = g_ref[0].astype(jnp.float32)                         # (tn, K, 3F)
    kg, vg, xpn = g[..., :F], g[..., F:2 * F], g[..., 2 * F:]

    # fc_delta layer 1 via linearity: rel @ dw1 == xyz@dw1 - knn_xyz@dw1 (pre-projected)
    h = jnp.maximum(xp[:, None, :] - xpn + db1_ref[...], 0.0)          # (tn, K, F)
    pos = (jnp.dot(h.reshape(M, F).astype(_MXU_DTYPE), dw2_ref[...],
                   preferred_element_type=jnp.float32)
           + db2_ref[...]).reshape(tn, K, F)                           # fc_delta output

    # fc_gamma(q - k + pos_enc)
    pre = (q[:, None, :] - kg + pos).reshape(M, F)
    a = jnp.maximum(jnp.dot(pre.astype(_MXU_DTYPE), gw1_ref[...],
                            preferred_element_type=jnp.float32) + gb1_ref[...], 0.0)
    a = jnp.dot(a.astype(_MXU_DTYPE), gw2_ref[...],
                preferred_element_type=jnp.float32) + gb2_ref[...]     # (M, F)

    # L1-style normalization over the feature axis (as written in the source)
    a = a * pl.reciprocal(jnp.sum(jnp.abs(a) + 1e-5, axis=-1, keepdims=True),
                          approx=True)
    attn_ref[0] = a.astype(attn_ref.dtype)                   # natural (M, F) layout, no relayout
    a3 = a.reshape(tn, K, F)
    res_ref[0] = jnp.sum(a3 * (vg + pos), axis=1).astype(res_ref.dtype)


def attn_fused_pallas(qx, g_nbr, db1, dw2, db2, gw1, gb1, gw2, gb2, tn, vmem):
    B, N, K, F3 = g_nbr.shape
    F = F3 // 3

    def wspec(shape):
        return pl.BlockSpec(shape, lambda b, n: (0,) * len(shape))

    attn, res = pl.pallas_call(
        _attn_fused_kernel,
        out_shape=(jax.ShapeDtypeStruct((B, N * K, F), jnp.float32),
                   jax.ShapeDtypeStruct((B, N, F), jnp.float32)),
        grid=(B, pl.cdiv(N, tn)),
        in_specs=[pl.BlockSpec((1, tn, 2 * F), lambda b, n: (b, n, 0)),
                  pl.BlockSpec((1, tn, K, F3), lambda b, n: (b, n, 0, 0)),
                  wspec((1, F)), wspec((F, F)), wspec((1, F)),
                  wspec((F, F)), wspec((1, F)), wspec((F, F)), wspec((1, F))],
        out_specs=(pl.BlockSpec((1, tn * K, F), lambda b, n: (b, n, 0)),
                   pl.BlockSpec((1, tn, F), lambda b, n: (b, n, 0))),
        compiler_params=_cparams(vmem, "parallel", "parallel"),
    )(qx, g_nbr, db1, dw2, db2, gw1, gb1, gw2, gb2)
    return attn, res


# ------------- kernel C: fc2 GEMM (prebuilt weight) with fused residual -------------

def _fc2_res_kernel(r_ref, x_ref, wc_ref, o_ref):
    y = jnp.dot(r_ref[0].astype(_MXU_DTYPE), wc_ref[0],
                preferred_element_type=jnp.float32)
    o_ref[0] = (y + x_ref[0]).astype(o_ref.dtype)


def fc2_residual_pallas(res, x, wc, tn, vmem):
    B, N, C = res.shape
    F = wc.shape[-1]
    return pl.pallas_call(
        _fc2_res_kernel,
        out_shape=jax.ShapeDtypeStruct((B, N, F), jnp.float32),
        grid=(B, pl.cdiv(N, tn)),
        in_specs=[pl.BlockSpec((1, tn, C), lambda b, n: (b, n, 0)),
                  pl.BlockSpec((1, tn, F), lambda b, n: (b, n, 0)),
                  pl.BlockSpec((1, C, F), lambda b, n: (b, 0, 0))],
        out_specs=pl.BlockSpec((1, tn, F), lambda b, n: (b, n, 0)),
        compiler_params=_cparams(vmem, "parallel", "parallel"),
    )(res, x, wc)


# ------------------------------ Glue (JAX) ------------------------------

def knn_indices(xyz, k):
    sq = jnp.sum(xyz * xyz, axis=-1)
    d = sq[:, :, None] + sq[:, None, :] - 2.0 * jnp.einsum('bnd,bmd->bnm', xyz, xyz)
    # TODO(synk): lax.top_k may order exact distance ties differently from torch argsort.
    _, idx = jax.lax.top_k(-d, k)
    return idx


def index_points(points, idx):
    # points (B, N, C), idx (B, S, K) -> (B, S, K, C)
    return jnp.take_along_axis(points[:, :, None, :], idx[..., None], axis=1)


def mlinear_weight(mean_x, p):
    # Data-dependent MLinear weight, tiny (B, C, d_out) -> built in plain JAX.
    wc = mean_x[:, None, :] * p["W1"][None] - mean_x[:, :, None] * p["W2"][None]
    wc = jnp.einsum('bij,jo->bio', wc, p["lw"]) + p["lb"]
    return wc / jnp.sum(jnp.abs(wc) + 1e-5, axis=-1, keepdims=True)


def ctransformer_forward(params, features, xyz, k_nn):
    B, N, d_points = features.shape
    C = params["fc1_w"].shape[1]          # d_model
    F = params["w_qs"]["lw"].shape[1]     # == d_model
    vmem = _vmem_budget()

    knn_idx = knn_indices(xyz, k_nn)                                   # (B, N, K)

    # q/k/v MLinear weights: mean_N(fc1(features)) == fc1(mean_N(features)) (fc1 affine).
    mean_x = jnp.mean(features, axis=1) @ params["fc1_w"] + params["fc1_b"]   # (B, C)
    wcat = jnp.concatenate([mlinear_weight(mean_x, params["w_qs"]),
                            mlinear_weight(mean_x, params["w_ks"]),
                            mlinear_weight(mean_x, params["w_vs"])],
                           axis=-1).astype(_MXU_DTYPE)                 # (B, C, 3F)

    # kernel A: fused fc1 (VPU broadcast-FMAs) + wide qkv GEMM, row-tiled & parallel.
    tn_a = _pick_tile(N, (d_points + C + 4 * F) * 4 * 2, vmem)
    x, qkv = fc1_qkv_pallas(features, params["fc1_w"], params["fc1_b"], wcat, tn_a, vmem)
    q = qkv[..., :F]

    # fc_delta layer 1 via linearity: project xyz once (tiny), and gather the
    # projection together with k and v in ONE bf16 gather; the K-amplified f32
    # k/v copies and the 3-wide rel tensor never touch HBM.
    xyz_proj = jnp.einsum('bnd,df->bnf', xyz, params["fcd_w1"])        # (B, N, F)
    g_nbr = index_points(jnp.concatenate([qkv[..., F:], xyz_proj], axis=-1),
                         knn_idx).astype(_MXU_DTYPE)                   # (B, N, K, 3F) bf16
    qx = jnp.concatenate([q, xyz_proj], axis=-1)                       # (B, N, 2F) f32

    dw2 = params["fcd_w2"].astype(_MXU_DTYPE)                          # pre-cast once
    gw1 = params["fcg_w1"].astype(_MXU_DTYPE)
    gw2 = params["fcg_w2"].astype(_MXU_DTYPE)
    tn_b = _pick_tile(N, k_nn * F * 52, vmem)

    # TODO(synk): the reference forward reads `attn` before assigning it (bug in the
    # source); we use the canonical Point-Transformer definition
    # attn = fc_gamma(q[:, :, None] - k + pos_enc) ahead of the source's L1-style
    # normalization over the feature axis.
    attn_flat, res = attn_fused_pallas(qx, g_nbr,
                                       params["fcd_b1"], dw2, params["fcd_b2"],
                                       gw1, params["fcg_b1"], gw2, params["fcg_b2"],
                                       tn_b, vmem)
    attn = attn_flat.reshape(B, N, k_nn, F)

    # fc2 (MLinear): weight from the full-N mean of res (plain JAX), then a
    # row-tiled GEMM with the residual add fused into the kernel epilogue.
    wc2 = mlinear_weight(jnp.mean(res, axis=1), params["fc2"]).astype(_MXU_DTYPE)
    tn_c = _pick_tile(N, 4 * F * 4 * 2, vmem)
    out = fc2_residual_pallas(res, x, wc2, tn_c, vmem)
    return out, attn


# --------------------------- Parameter setup ----------------------------

def init_linear(key, d_in, d_out):
    kw, kb = jax.random.split(key)
    bound = 1.0 / math.sqrt(d_in)
    w = jax.random.uniform(kw, (d_in, d_out), jnp.float32, -bound, bound)
    b = jax.random.uniform(kb, (1, d_out), jnp.float32, -bound, bound)
    return w, b


def init_mlinear(key, d_in, d_out):
    k1, k2, k3 = jax.random.split(key, 3)
    lw, lb = init_linear(k1, d_in, d_out)
    bound = 1.0 / math.sqrt(d_in)  # kaiming_uniform(a=sqrt(5)) on (d_in, d_in)
    return {"W1": jax.random.uniform(k2, (d_in, d_in), jnp.float32, -bound, bound),
            "W2": jax.random.uniform(k3, (d_in, d_in), jnp.float32, -bound, bound),
            "lw": lw, "lb": lb}


if __name__ == "__main__":
    B, N, d_points, d_model, k_nn = 2, 16, 4, 32, 8

    root = jax.random.PRNGKey(0)
    keys = jax.random.split(root, 12)

    fc1_w, fc1_b = init_linear(keys[0], d_points, d_model)
    fcd_w1, fcd_b1 = init_linear(keys[1], 3, d_model)
    fcd_w2, fcd_b2 = init_linear(keys[2], d_model, d_model)
    fcg_w1, fcg_b1 = init_linear(keys[3], d_model, d_model)
    fcg_w2, fcg_b2 = init_linear(keys[4], d_model, d_model)

    params = {
        "fc1_w": fc1_w, "fc1_b": fc1_b,
        "fcd_w1": fcd_w1, "fcd_b1": fcd_b1,
        "fcd_w2": fcd_w2, "fcd_b2": fcd_b2,
        "fcg_w1": fcg_w1, "fcg_b1": fcg_b1,
        "fcg_w2": fcg_w2, "fcg_b2": fcg_b2,
        "w_qs": init_mlinear(keys[5], d_model, d_model),
        "w_ks": init_mlinear(keys[6], d_model, d_model),
        "w_vs": init_mlinear(keys[7], d_model, d_model),
        "fc2": init_mlinear(keys[8], d_model, d_model),
        # fc3 (MLinear) and self.bn (BatchNorm1d) are declared in __init__ but
        # never used in forward(); omitted.
    }

    features = jax.random.normal(keys[9], (B, N, d_points), jnp.float32)
    xyz = jax.random.normal(keys[10], (B, N, 3), jnp.float32)

    fwd = jax.jit(partial(ctransformer_forward, k_nn=k_nn))
    res, attn = fwd(params, features, xyz)
    jax.block_until_ready((res, attn))
    assert res.shape == (B, N, d_model) and attn.shape == (B, N, k_nn, d_model)
    assert bool(jnp.all(jnp.isfinite(res))) and bool(jnp.all(jnp.isfinite(attn)))
    print("KERNEL_OK")
</pallas_src>

<mosaic_0001>
module attributes {stable_mosaic.version = 11 : i64} {
  func.func @_fc1_qkv_kernel(%arg0: i32, %arg1: i32, %arg2: memref<1x16x4xf32, #tpu.memory_space<vmem>>, %arg3: memref<4x32xf32, #tpu.memory_space<vmem>>, %arg4: memref<1x32xf32, #tpu.memory_space<vmem>>, %arg5: memref<1x32x96xbf16, #tpu.memory_space<vmem>>, %arg6: memref<1x16x32xf32, #tpu.memory_space<vmem>>, %arg7: memref<1x16x96xf32, #tpu.memory_space<vmem>>) attributes {dimension_semantics = [#tpu.dimension_semantics<parallel>, #tpu.dimension_semantics<parallel>], iteration_bounds = array<i64: 2, 1>, scalar_prefetch = 0 : i64, scratch_operands = 0 : i64, tpu.core_type = #tpu.core_type<tc>, window_params = [{transform_indices = @transform_0, window_bounds = array<i64: 1, 16, 4>}, {pipeline_mode = #tpu.pipeline_mode<synchronous>, transform_indices = @transform_1, window_bounds = array<i64: 4, 32>}, {pipeline_mode = #tpu.pipeline_mode<synchronous>, transform_indices = @transform_2, window_bounds = array<i64: 1, 32>}, {transform_indices = @transform_3, window_bounds = array<i64: 1, 32, 96>}, {transform_indices = @transform_4, window_bounds = array<i64: 1, 16, 32>}, {transform_indices = @transform_5, window_bounds = array<i64: 1, 16, 96>}]} {
    %c0 = arith.constant 0 : index
    %c0_0 = arith.constant 0 : index
    %c0_1 = arith.constant 0 : index
    %0 = vector.load %arg2[%c0, %c0_0, %c0_1] : memref<1x16x4xf32, #tpu.memory_space<vmem>>, vector<1x16x4xf32>
    %1 = vector.shape_cast %0 : vector<1x16x4xf32> to vector<16x4xf32>
    %c0_2 = arith.constant 0 : index
    %c0_3 = arith.constant 0 : index
    %2 = vector.load %arg3[%c0_2, %c0_3] : memref<4x32xf32, #tpu.memory_space<vmem>>, vector<4x32xf32>
    %c0_4 = arith.constant 0 : index
    %c0_5 = arith.constant 0 : index
    %3 = vector.load %arg4[%c0_4, %c0_5] : memref<1x32xf32, #tpu.memory_space<vmem>>, vector<1x32xf32>
    %4 = vector.extract_strided_slice %1 {offsets = [0, 0], sizes = [16, 1], strides = [1, 1]} : vector<16x4xf32> to vector<16x1xf32>
    %5 = vector.extract_strided_slice %2 {offsets = [0, 0], sizes = [1, 32], strides = [1, 1]} : vector<4x32xf32> to vector<1x32xf32>
    %6 = vector.broadcast %4 : vector<16x1xf32> to vector<16x32xf32>
    %7 = vector.broadcast %5 : vector<1x32xf32> to vector<16x32xf32>
    %8 = arith.mulf %6, %7 : vector<16x32xf32>
    %9 = vector.broadcast %3 : vector<1x32xf32> to vector<16x32xf32>
    %10 = arith.addf %9, %8 : vector<16x32xf32>
    %11 = vector.extract_strided_slice %1 {offsets = [0, 1], sizes = [16, 1], strides = [1, 1]} : vector<16x4xf32> to vector<16x1xf32>
    %12 = vector.extract_strided_slice %2 {offsets = [1, 0], sizes = [1, 32], strides = [1, 1]} : vector<4x32xf32> to vector<1x32xf32>
    %13 = vector.broadcast %11 : vector<16x1xf32> to vector<16x32xf32>
    %14 = vector.broadcast %12 : vector<1x32xf32> to vector<16x32xf32>
    %15 = arith.mulf %13, %14 : vector<16x32xf32>
    %16 = arith.addf %10, %15 : vector<16x32xf32>
    %17 = vector.extract_strided_slice %1 {offsets = [0, 2], sizes = [16, 1], strides = [1, 1]} : vector<16x4xf32> to vector<16x1xf32>
    %18 = vector.extract_strided_slice %2 {offsets = [2, 0], sizes = [1, 32], strides = [1, 1]} : vector<4x32xf32> to vector<1x32xf32>
    %19 = vector.broadcast %17 : vector<16x1xf32> to vector<16x32xf32>
    %20 = vector.broadcast %18 : vector<1x32xf32> to vector<16x32xf32>
    %21 = arith.mulf %19, %20 : vector<16x32xf32>
    %22 = arith.addf %16, %21 : vector<16x32xf32>
    %23 = vector.extract_strided_slice %1 {offsets = [0, 3], sizes = [16, 1], strides = [1, 1]} : vector<16x4xf32> to vector<16x1xf32>
    %24 = vector.extract_strided_slice %2 {offsets = [3, 0], sizes = [1, 32], strides = [1, 1]} : vector<4x32xf32> to vector<1x32xf32>
    %25 = vector.broadcast %23 : vector<16x1xf32> to vector<16x32xf32>
    %26 = vector.broadcast %24 : vector<1x32xf32> to vector<16x32xf32>
    %27 = arith.mulf %25, %26 : vector<16x32xf32>
    %28 = arith.addf %22, %27 : vector<16x32xf32>
    %c0_6 = arith.constant 0 : index
    %c0_7 = arith.constant 0 : index
    %c0_8 = arith.constant 0 : index
    %29 = vector.load %arg6[%c0_6, %c0_7, %c0_8] : memref<1x16x32xf32, #tpu.memory_space<vmem>>, vector<1x16x32xf32>
    %30 = vector.shape_cast %29 : vector<1x16x32xf32> to vector<16x32xf32>
    %31 = vector.shape_cast %28 : vector<16x32xf32> to vector<1x16x32xf32>
    tpu.vector_store %arg6[%c0_6, %c0_7, %c0_8], %31 {strides = array<i32>} : memref<1x16x32xf32, #tpu.memory_space<vmem>>, vector<1x16x32xf32>,
    %32 = arith.truncf %28 : vector<16x32xf32> to vector<16x32xbf16>
    %c0_9 = arith.constant 0 : index
    %c0_10 = arith.constant 0 : index
    %c0_11 = arith.constant 0 : index
    %33 = vector.load %arg5[%c0_9, %c0_10, %c0_11] : memref<1x32x96xbf16, #tpu.memory_space<vmem>>, vector<1x32x96xbf16>
    %34 = vector.shape_cast %33 : vector<1x32x96xbf16> to vector<32x96xbf16>
    %cst = arith.constant dense<0.000000e+00> : vector<16x96xf32>
    %35 = tpu.matmul %32, %34, %cst {dimension_numbers = #tpu.dot_dimension_numbers<[1], [0], [0], [1], [0, 0, 1, 1], [], []>} : vector<16x32xbf16>, vector<32x96xbf16>, vector<16x96xf32> -> vector<16x96xf32>
    %c0_12 = arith.constant 0 : index
    %c0_13 = arith.constant 0 : index
    %c0_14 = arith.constant 0 : index
    %36 = vector.load %arg7[%c0_12, %c0_13, %c0_14] : memref<1x16x96xf32, #tpu.memory_space<vmem>>, vector<1x16x96xf32>
    %37 = vector.shape_cast %36 : vector<1x16x96xf32> to vector<16x96xf32>
    %38 = vector.shape_cast %35 : vector<16x96xf32> to vector<1x16x96xf32>
    tpu.vector_store %arg7[%c0_12, %c0_13, %c0_14], %38 {strides = array<i32>} : memref<1x16x96xf32, #tpu.memory_space<vmem>>, vector<1x16x96xf32>,
    return
  }
  func.func @transform_0(%arg0: i32, %arg1: i32) -> (i32, i32, i32) {
    %c0_i32 = arith.constant 0 : i32
    %c0_i32_0 = arith.constant 0 : i32
    return %arg0, %arg1, %c0_i32 : i32, i32, i32
  }
  func.func @transform_1(%arg0: i32, %arg1: i32) -> (i32, i32) {
    %c0_i32 = arith.constant 0 : i32
    %c0_i32_0 = arith.constant 0 : i32
    %c0_i32_1 = arith.constant 0 : i32
    return %c0_i32, %c0_i32_0 : i32, i32
  }
  func.func @transform_2(%arg0: i32, %arg1: i32) -> (i32, i32) {
    %c0_i32 = arith.constant 0 : i32
    %c0_i32_0 = arith.constant 0 : i32
    %c0_i32_1 = arith.constant 0 : i32
    return %c0_i32, %c0_i32_0 : i32, i32
  }
  func.func @transform_3(%arg0: i32, %arg1: i32) -> (i32, i32, i32) {
    %c0_i32 = arith.constant 0 : i32
    %c0_i32_0 = arith.constant 0 : i32
    %c0_i32_1 = arith.constant 0 : i32
    return %arg0, %c0_i32, %c0_i32_0 : i32, i32, i32
  }
  func.func @transform_4(%arg0: i32, %arg1: i32) -> (i32, i32, i32) {
    %c0_i32 = arith.constant 0 : i32
    %c0_i32_0 = arith.constant 0 : i32
    return %arg0, %arg1, %c0_i32 : i32, i32, i32
  }
  func.func @transform_5(%arg0: i32, %arg1: i32) -> (i32, i32, i32) {
    %c0_i32 = arith.constant 0 : i32
    %c0_i32_0 = arith.constant 0 : i32
    return %arg0, %arg1, %c0_i32 : i32, i32, i32
  }
}

module attributes {stable_mosaic.version = 11 : i64} {
  func.func @_attn_fused_kernel(%arg0: i32, %arg1: i32, %arg2: memref<1x16x64xf32, #tpu.memory_space<vmem>>, %arg3: memref<1x16x8x96xbf16, #tpu.memory_space<vmem>>, %arg4: memref<1x32xf32, #tpu.memory_space<vmem>>, %arg5: memref<32x32xbf16, #tpu.memory_space<vmem>>, %arg6: memref<1x32xf32, #tpu.memory_space<vmem>>, %arg7: memref<32x32xbf16, #tpu.memory_space<vmem>>, %arg8: memref<1x32xf32, #tpu.memory_space<vmem>>, %arg9: memref<32x32xbf16, #tpu.memory_space<vmem>>, %arg10: memref<1x32xf32, #tpu.memory_space<vmem>>, %arg11: memref<1x128x32xf32, #tpu.memory_space<vmem>>, %arg12: memref<1x16x32xf32, #tpu.memory_space<vmem>>) attributes {dimension_semantics = [#tpu.dimension_semantics<parallel>, #tpu.dimension_semantics<parallel>], iteration_bounds = array<i64: 2, 1>, scalar_prefetch = 0 : i64, scratch_operands = 0 : i64, tpu.core_type = #tpu.core_type<tc>, window_params = [{transform_indices = @transform_0, window_bounds = array<i64: 1, 16, 64>}, {transform_indices = @transform_1, window_bounds = array<i64: 1, 16, 8, 96>}, {pipeline_mode = #tpu.pipeline_mode<synchronous>, transform_indices = @transform_2, window_bounds = array<i64: 1, 32>}, {pipeline_mode = #tpu.pipeline_mode<synchronous>, transform_indices = @transform_3, window_bounds = array<i64: 32, 32>}, {pipeline_mode = #tpu.pipeline_mode<synchronous>, transform_indices = @transform_4, window_bounds = array<i64: 1, 32>}, {pipeline_mode = #tpu.pipeline_mode<synchronous>, transform_indices = @transform_5, window_bounds = array<i64: 32, 32>}, {pipeline_mode = #tpu.pipeline_mode<synchronous>, transform_indices = @transform_6, window_bounds = array<i64: 1, 32>}, {pipeline_mode = #tpu.pipeline_mode<synchronous>, transform_indices = @transform_7, window_bounds = array<i64: 32, 32>}, {pipeline_mode = #tpu.pipeline_mode<synchronous>, transform_indices = @transform_8, window_bounds = array<i64: 1, 32>}, {transform_indices = @transform_9, window_bounds = array<i64: 1, 128, 32>}, {transform_indices = @transform_10, window_bounds = array<i64: 1, 16, 32>}]} {
    %c0 = arith.constant 0 : index
    %c0_0 = arith.constant 0 : index
    %c0_1 = arith.constant 0 : index
    %0 = vector.load %arg2[%c0, %c0_0, %c0_1] : memref<1x16x64xf32, #tpu.memory_space<vmem>>, vector<1x16x64xf32>
    %1 = vector.shape_cast %0 : vector<1x16x64xf32> to vector<16x64xf32>
    %2 = vector.extract_strided_slice %1 {offsets = [0, 0], sizes = [16, 32], strides = [1, 1]} : vector<16x64xf32> to vector<16x32xf32>
    %3 = vector.extract_strided_slice %1 {offsets = [0, 32], sizes = [16, 32], strides = [1, 1]} : vector<16x64xf32> to vector<16x32xf32>
    %c0_2 = arith.constant 0 : index
    %c0_3 = arith.constant 0 : index
    %c0_4 = arith.constant 0 : index
    %c0_5 = arith.constant 0 : index
    %4 = vector.load %arg3[%c0_2, %c0_3, %c0_4, %c0_5] : memref<1x16x8x96xbf16, #tpu.memory_space<vmem>>, vector<1x16x8x96xbf16>
    %5 = vector.shape_cast %4 : vector<1x16x8x96xbf16> to vector<16x8x96xbf16>
    %6 = arith.extf %5 : vector<16x8x96xbf16> to vector<16x8x96xf32>
    %7 = vector.extract_strided_slice %6 {offsets = [0, 0, 0], sizes = [16, 8, 32], strides = [1, 1, 1]} : vector<16x8x96xf32> to vector<16x8x32xf32>
    %8 = vector.extract_strided_slice %6 {offsets = [0, 0, 32], sizes = [16, 8, 32], strides = [1, 1, 1]} : vector<16x8x96xf32> to vector<16x8x32xf32>
    %9 = vector.extract_strided_slice %6 {offsets = [0, 0, 64], sizes = [16, 8, 32], strides = [1, 1, 1]} : vector<16x8x96xf32> to vector<16x8x32xf32>
    %10 = vector.shape_cast %3 : vector<16x32xf32> to vector<16x1x32xf32>
    %11 = vector.broadcast %10 : vector<16x1x32xf32> to vector<16x8x32xf32>
    %12 = arith.subf %11, %9 : vector<16x8x32xf32>
    %c0_6 = arith.constant 0 : index
    %c0_7 = arith.constant 0 : index
    %13 = vector.load %arg4[%c0_6, %c0_7] : memref<1x32xf32, #tpu.memory_space<vmem>>, vector<1x32xf32>
    %14 = vector.shape_cast %13 : vector<1x32xf32> to vector<1x1x32xf32>
    %15 = vector.broadcast %14 : vector<1x1x32xf32> to vector<16x8x32xf32>
    %16 = arith.addf %12, %15 : vector<16x8x32xf32>
    %cst = arith.constant 0.000000e+00 : f32
    %17 = vector.broadcast %cst : f32 to vector<16x8x32xf32>
    %18 = arith.maximumf %16, %17 : vector<16x8x32xf32>
    %19 = vector.shape_cast %18 : vector<16x8x32xf32> to vector<128x32xf32>
    %20 = arith.truncf %19 : vector<128x32xf32> to vector<128x32xbf16>
    %c0_8 = arith.constant 0 : index
    %c0_9 = arith.constant 0 : index
    %21 = vector.load %arg5[%c0_8, %c0_9] : memref<32x32xbf16, #tpu.memory_space<vmem>>, vector<32x32xbf16>
    %cst_10 = arith.constant dense<0.000000e+00> : vector<128x32xf32>
    %22 = tpu.matmul %20, %21, %cst_10 {dimension_numbers = #tpu.dot_dimension_numbers<[1], [0], [0], [1], [0, 0, 1, 1], [], []>} : vector<128x32xbf16>, vector<32x32xbf16>, vector<128x32xf32> -> vector<128x32xf32>
    %c0_11 = arith.constant 0 : index
    %c0_12 = arith.constant 0 : index
    %23 = vector.load %arg6[%c0_11, %c0_12] : memref<1x32xf32, #tpu.memory_space<vmem>>, vector<1x32xf32>
    %24 = vector.broadcast %23 : vector<1x32xf32> to vector<128x32xf32>
    %25 = arith.addf %22, %24 : vector<128x32xf32>
    %26 = vector.shape_cast %25 : vector<128x32xf32> to vector<16x8x32xf32>
    %27 = vector.shape_cast %2 : vector<16x32xf32> to vector<16x1x32xf32>
    %28 = vector.broadcast %27 : vector<16x1x32xf32> to vector<16x8x32xf32>
    %29 = arith.subf %28, %7 : vector<16x8x32xf32>
    %30 = arith.addf %29, %26 : vector<16x8x32xf32>
    %31 = vector.shape_cast %30 : vector<16x8x32xf32> to vector<128x32xf32>
    %32 = arith.truncf %31 : vector<128x32xf32> to vector<128x32xbf16>
    %c0_13 = arith.constant 0 : index
    %c0_14 = arith.constant 0 : index
    %33 = vector.load %arg7[%c0_13, %c0_14] : memref<32x32xbf16, #tpu.memory_space<vmem>>, vector<32x32xbf16>
    %cst_15 = arith.constant dense<0.000000e+00> : vector<128x32xf32>
    %34 = tpu.matmul %32, %33, %cst_15 {dimension_numbers = #tpu.dot_dimension_numbers<[1], [0], [0], [1], [0, 0, 1, 1], [], []>} : vector<128x32xbf16>, vector<32x32xbf16>, vector<128x32xf32> -> vector<128x32xf32>
    %c0_16 = arith.constant 0 : index
    %c0_17 = arith.constant 0 : index
    %35 = vector.load %arg8[%c0_16, %c0_17] : memref<1x32xf32, #tpu.memory_space<vmem>>, vector<1x32xf32>
    %36 = vector.broadcast %35 : vector<1x32xf32> to vector<128x32xf32>
    %37 = arith.addf %34, %36 : vector<128x32xf32>
    %cst_18 = arith.constant 0.000000e+00 : f32
    %38 = vector.broadcast %cst_18 : f32 to vector<128x32xf32>
    %39 = arith.maximumf %37, %38 : vector<128x32xf32>
    %40 = arith.truncf %39 : vector<128x32xf32> to vector<128x32xbf16>
    %c0_19 = arith.constant 0 : index
    %c0_20 = arith.constant 0 : index
    %41 = vector.load %arg9[%c0_19, %c0_20] : memref<32x32xbf16, #tpu.memory_space<vmem>>, vector<32x32xbf16>
    %cst_21 = arith.constant dense<0.000000e+00> : vector<128x32xf32>
    %42 = tpu.matmul %40, %41, %cst_21 {dimension_numbers = #tpu.dot_dimension_numbers<[1], [0], [0], [1], [0, 0, 1, 1], [], []>} : vector<128x32xbf16>, vector<32x32xbf16>, vector<128x32xf32> -> vector<128x32xf32>
    %c0_22 = arith.constant 0 : index
    %c0_23 = arith.constant 0 : index
    %43 = vector.load %arg10[%c0_22, %c0_23] : memref<1x32xf32, #tpu.memory_space<vmem>>, vector<1x32xf32>
    %44 = vector.broadcast %43 : vector<1x32xf32> to vector<128x32xf32>
    %45 = arith.addf %42, %44 : vector<128x32xf32>
    %46 = math.absf %45 : vector<128x32xf32>
    %cst_24 = arith.constant 9.99999974E-6 : f32
    %47 = vector.broadcast %cst_24 : f32 to vector<128x32xf32>
    %48 = arith.addf %46, %47 : vector<128x32xf32>
    %cst_25 = arith.constant dense<0.000000e+00> : vector<128xf32>
    %49 = vector.multi_reduction <add>, %48, %cst_25 [1] : vector<128x32xf32> to vector<128xf32>
    %50 = vector.shape_cast %49 : vector<128xf32> to vector<128x1xf32>
    %51 = tpu.reciprocal %50 {approx = true} : vector<128x1xf32> -> vector<128x1xf32>
    %52 = vector.broadcast %51 : vector<128x1xf32> to vector<128x32xf32>
    %53 = arith.mulf %45, %52 : vector<128x32xf32>
    %c0_26 = arith.constant 0 : index
    %c0_27 = arith.constant 0 : index
    %c0_28 = arith.constant 0 : index
    %54 = vector.load %arg11[%c0_26, %c0_27, %c0_28] : memref<1x128x32xf32, #tpu.memory_space<vmem>>, vector<1x128x32xf32>
    %55 = vector.shape_cast %54 : vector<1x128x32xf32> to vector<128x32xf32>
    %56 = vector.shape_cast %53 : vector<128x32xf32> to vector<1x128x32xf32>
    tpu.vector_store %arg11[%c0_26, %c0_27, %c0_28], %56 {strides = array<i32>} : memref<1x128x32xf32, #tpu.memory_space<vmem>>, vector<1x128x32xf32>,
    %57 = vector.shape_cast %53 : vector<128x32xf32> to vector<16x8x32xf32>
    %58 = arith.addf %8, %26 : vector<16x8x32xf32>
    %59 = arith.mulf %57, %58 : vector<16x8x32xf32>
    %cst_29 = arith.constant dense<0.000000e+00> : vector<16x32xf32>
    %60 = vector.multi_reduction <add>, %59, %cst_29 [1] : vector<16x8x32xf32> to vector<16x32xf32>
    %c0_30 = arith.constant 0 : index
    %c0_31 = arith.constant 0 : index
    %c0_32 = arith.constant 0 : index
    %61 = vector.load %arg12[%c0_30, %c0_31, %c0_32] : memref<1x16x32xf32, #tpu.memory_space<vmem>>, vector<1x16x32xf32>
    %62 = vector.shape_cast %61 : vector<1x16x32xf32> to vector<16x32xf32>
    %63 = vector.shape_cast %60 : vector<16x32xf32> to vector<1x16x32xf32>
    tpu.vector_store %arg12[%c0_30, %c0_31, %c0_32], %63 {strides = array<i32>} : memref<1x16x32xf32, #tpu.memory_space<vmem>>, vector<1x16x32xf32>,
    return
  }
  func.func @transform_0(%arg0: i32, %arg1: i32) -> (i32, i32, i32) {
    %c0_i32 = arith.constant 0 : i32
    %c0_i32_0 = arith.constant 0 : i32
    return %arg0, %arg1, %c0_i32 : i32, i32, i32
  }
  func.func @transform_1(%arg0: i32, %arg1: i32) -> (i32, i32, i32, i32) {
    %c0_i32 = arith.constant 0 : i32
    %c0_i32_0 = arith.constant 0 : i32
    %c0_i32_1 = arith.constant 0 : i32
    return %arg0, %arg1, %c0_i32, %c0_i32_0 : i32, i32, i32, i32
  }
  func.func @transform_2(%arg0: i32, %arg1: i32) -> (i32, i32) {
    %c0_i32 = arith.constant 0 : i32
    %c0_i32_0 = arith.constant 0 : i32
    %c0_i32_1 = arith.constant 0 : i32
    return %c0_i32, %c0_i32_0 : i32, i32
  }
  func.func @transform_3(%arg0: i32, %arg1: i32) -> (i32, i32) {
    %c0_i32 = arith.constant 0 : i32
    %c0_i32_0 = arith.constant 0 : i32
    %c0_i32_1 = arith.constant 0 : i32
    return %c0_i32, %c0_i32_0 : i32, i32
  }
  func.func @transform_4(%arg0: i32, %arg1: i32) -> (i32, i32) {
    %c0_i32 = arith.constant 0 : i32
    %c0_i32_0 = arith.constant 0 : i32
    %c0_i32_1 = arith.constant 0 : i32
    return %c0_i32, %c0_i32_0 : i32, i32
  }
  func.func @transform_5(%arg0: i32, %arg1: i32) -> (i32, i32) {
    %c0_i32 = arith.constant 0 : i32
    %c0_i32_0 = arith.constant 0 : i32
    %c0_i32_1 = arith.constant 0 : i32
    return %c0_i32, %c0_i32_0 : i32, i32
  }
  func.func @transform_6(%arg0: i32, %arg1: i32) -> (i32, i32) {
    %c0_i32 = arith.constant 0 : i32
    %c0_i32_0 = arith.constant 0 : i32
    %c0_i32_1 = arith.constant 0 : i32
    return %c0_i32, %c0_i32_0 : i32, i32
  }
  func.func @transform_7(%arg0: i32, %arg1: i32) -> (i32, i32) {
    %c0_i32 = arith.constant 0 : i32
    %c0_i32_0 = arith.constant 0 : i32
    %c0_i32_1 = arith.constant 0 : i32
    return %c0_i32, %c0_i32_0 : i32, i32
  }
  func.func @transform_8(%arg0: i32, %arg1: i32) -> (i32, i32) {
    %c0_i32 = arith.constant 0 : i32
    %c0_i32_0 = arith.constant 0 : i32
    %c0_i32_1 = arith.constant 0 : i32
    return %c0_i32, %c0_i32_0 : i32, i32
  }
  func.func @transform_9(%arg0: i32, %arg1: i32) -> (i32, i32, i32) {
    %c0_i32 = arith.constant 0 : i32
    %c0_i32_0 = arith.constant 0 : i32
    return %arg0, %arg1, %c0_i32 : i32, i32, i32
  }
  func.func @transform_10(%arg0: i32, %arg1: i32) -> (i32, i32, i32) {
    %c0_i32 = arith.constant 0 : i32
    %c0_i32_0 = arith.constant 0 : i32
    return %arg0, %arg1, %c0_i32 : i32, i32, i32
  }
}

module attributes {stable_mosaic.version = 11 : i64} {
  func.func @_fc2_res_kernel(%arg0: i32, %arg1: i32, %arg2: memref<1x16x32xf32, #tpu.memory_space<vmem>>, %arg3: memref<1x16x32xf32, #tpu.memory_space<vmem>>, %arg4: memref<1x32x32xbf16, #tpu.memory_space<vmem>>, %arg5: memref<1x16x32xf32, #tpu.memory_space<vmem>>) attributes {dimension_semantics = [#tpu.dimension_semantics<parallel>, #tpu.dimension_semantics<parallel>], iteration_bounds = array<i64: 2, 1>, scalar_prefetch = 0 : i64, scratch_operands = 0 : i64, tpu.core_type = #tpu.core_type<tc>, window_params = [{transform_indices = @transform_0, window_bounds = array<i64: 1, 16, 32>}, {transform_indices = @transform_1, window_bounds = array<i64: 1, 16, 32>}, {transform_indices = @transform_2, window_bounds = array<i64: 1, 32, 32>}, {transform_indices = @transform_3, window_bounds = array<i64: 1, 16, 32>}]} {
    %c0 = arith.constant 0 : index
    %c0_0 = arith.constant 0 : index
    %c0_1 = arith.constant 0 : index
    %0 = vector.load %arg2[%c0, %c0_0, %c0_1] : memref<1x16x32xf32, #tpu.memory_space<vmem>>, vector<1x16x32xf32>
    %1 = vector.shape_cast %0 : vector<1x16x32xf32> to vector<16x32xf32>
    %2 = arith.truncf %1 : vector<16x32xf32> to vector<16x32xbf16>
    %c0_2 = arith.constant 0 : index
    %c0_3 = arith.constant 0 : index
    %c0_4 = arith.constant 0 : index
    %3 = vector.load %arg4[%c0_2, %c0_3, %c0_4] : memref<1x32x32xbf16, #tpu.memory_space<vmem>>, vector<1x32x32xbf16>
    %4 = vector.shape_cast %3 : vector<1x32x32xbf16> to vector<32x32xbf16>
    %cst = arith.constant dense<0.000000e+00> : vector<16x32xf32>
    %5 = tpu.matmul %2, %4, %cst {dimension_numbers = #tpu.dot_dimension_numbers<[1], [0], [0], [1], [0, 0, 1, 1], [], []>} : vector<16x32xbf16>, vector<32x32xbf16>, vector<16x32xf32> -> vector<16x32xf32>
    %c0_5 = arith.constant 0 : index
    %c0_6 = arith.constant 0 : index
    %c0_7 = arith.constant 0 : index
    %6 = vector.load %arg3[%c0_5, %c0_6, %c0_7] : memref<1x16x32xf32, #tpu.memory_space<vmem>>, vector<1x16x32xf32>
    %7 = vector.shape_cast %6 : vector<1x16x32xf32> to vector<16x32xf32>
    %8 = arith.addf %5, %7 : vector<16x32xf32>
    %c0_8 = arith.constant 0 : index
    %c0_9 = arith.constant 0 : index
    %c0_10 = arith.constant 0 : index
    %9 = vector.load %arg5[%c0_8, %c0_9, %c0_10] : memref<1x16x32xf32, #tpu.memory_space<vmem>>, vector<1x16x32xf32>
    %10 = vector.shape_cast %9 : vector<1x16x32xf32> to vector<16x32xf32>
    %11 = vector.shape_cast %8 : vector<16x32xf32> to vector<1x16x32xf32>
    tpu.vector_store %arg5[%c0_8, %c0_9, %c0_10], %11 {strides = array<i32>} : memref<1x16x32xf32, #tpu.memory_space<vmem>>, vector<1x16x32xf32>,
    return
  }
  func.func @transform_0(%arg0: i32, %arg1: i32) -> (i32, i32, i32) {
    %c0_i32 = arith.constant 0 : i32
    %c0_i32_0 = arith.constant 0 : i32
    return %arg0, %arg1, %c0_i32 : i32, i32, i32
  }
  func.func @transform_1(%arg0: i32, %arg1: i32) -> (i32, i32, i32) {
    %c0_i32 = arith.constant 0 : i32
    %c0_i32_0 = arith.constant 0 : i32
    return %arg0, %arg1, %c0_i32 : i32, i32, i32
  }
  func.func @transform_2(%arg0: i32, %arg1: i32) -> (i32, i32, i32) {
    %c0_i32 = arith.constant 0 : i32
    %c0_i32_0 = arith.constant 0 : i32
    %c0_i32_1 = arith.constant 0 : i32
    return %arg0, %c0_i32, %c0_i32_0 : i32, i32, i32
  }
  func.func @transform_3(%arg0: i32, %arg1: i32) -> (i32, i32, i32) {
    %c0_i32 = arith.constant 0 : i32
    %c0_i32_0 = arith.constant 0 : i32
    return %arg0, %arg1, %c0_i32 : i32, i32, i32
  }
}

</mosaic_0001>

<llo_original>
// kernel: ctransformer_forward.3
$region0: #{ctransformer_forward.3}
  #allocation0 [shape = 'u32[]', space=smem, size = 0x4, offset = 0x4, fixed_abs, tag = 'smem constant byte address 0x4 - core index']
  #allocation1 [shape = 'u32[144,128]{1,0:T(1,128)}', space=vmem, size = 0x12000, scoped, tag = 'internal scratch']
  %s0 = inlined_call_operand.vmem [shape: f32[2,16,4], index: 0, kind: input, shape index: {}]
  %s1 = inlined_call_operand.vmem [shape: f32[4,32], index: 1, kind: input, shape index: {}]
  %s2 = inlined_call_operand.vmem [shape: f32[1,32], index: 2, kind: input, shape index: {}]
  %s3 = inlined_call_operand.vmem [shape: bf16[2,32,96], index: 3, kind: input, shape index: {}]
  %s4 = inlined_call_operand.vmem [shape: f32[2,16,32], index: 4, kind: output, shape index: {0}]
  %s5 = inlined_call_operand.vmem [shape: f32[2,16,96], index: 5, kind: output, shape index: {1}]
  %6 = xla_tuple %s4, %s5
  %s7 = sld [smem:[#allocation0]]
  $region57: #{ctransformer_forward.3} parent=0
    _
  %s9 = ssub.s32 1, %s7
  %s10 = scalar_select 0, %s9, %s7
  loop: start=0, step=1, limit=4
  $region2: #{ctransformer_forward.3} parent=0 // loop_pre_header
    _
  $region3: #{ctransformer_forward.3} parent=0 // loop_header
    %s12 = sphi 0, %s16
    %p13 = scmp.ge.s32.totalorder %s12, 4
    %s19 = sphi 0, %s31
    %s20 = sphi 0, %s27
    %s21 = sphi 0, %s19
    %s22 = sphi 0, %s20
    %s23 = sphi 0, %s21
    %s24 = sphi 0, %s22
    %s36 = sphi 0, %s38
    %s39 = sphi 0, %s36
    %s40 = sphi 0, %s39
    %s56 = sphi 0, %s40
    %s60 = sphi 0, %s60
    %s62 = sphi 0, %s60
    %s63 = sphi 0, %s62
    %s77 = sphi 0, %s63
    %s81 = sphi 0, %s81
    %s83 = sphi 0, %s81
    %s84 = sphi 0, %s83
    %s98 = sphi 0, %s84
    %s104 = sphi 0, %s106
    %s107 = sphi 0, %s104
    %s108 = sphi 0, %s107
    %s124 = sphi 0, %s108
    %s132 = sphi 0, %s134
    %s135 = sphi 0, %s132
    %s136 = sphi 0, %s135
    %s152 = sphi 0, %s136
    %s160 = sphi 0, %s162
    %s163 = sphi 0, %s160
    %s164 = sphi 0, %s163
    %s180 = sphi 0, %s164
  $region4: #{ctransformer_forward.3} parent=0 // loop_header_branch
    %15 = sbr.rel (%p13) target = $region8
  $region5: #{ctransformer_forward.3} parent=0 // loop_body
    %s17 = ssub.s32 %s12, 1
    %s18 = ssub.s32 %s12, 2
    %s25 = sadd.s32 1, %s20
    %p26 = scmp.ge.s32.totalorder %s25, 1
    %s27 = scalar_select %p26, 0, %s25
    %s28 = sadd.s32 1, %s19
    %s29 = scalar_select %p26, %s28, %s19
    %p30 = scmp.ge.s32.totalorder %s29, 2
    %s31 = scalar_select %p30, 0, %s29
    %s32 = ssub.s32 %s19, %s31
    %s33 = ssub.s32 %s20, %s27
    %s34 = sor.u32 %s32, %s33
    %p35 = scmp.eq.s32.totalorder %s34, 0
    %s37 = sadd.s32 %s36, 1
    %s38 = scalar_select %p35, %s36, %s37
    %p41 = pneg %p35
    %p42 = scmp.eq.s32.totalorder %s12, 1
    %p43 = por %p41, %p42
    %p44 = scmp.ne.s32.totalorder %s36, %s39
    %p45 = scmp.eq.s32.totalorder %s12, 0
    %p46 = por %p44, %p45
    %p47 = scmp.ne.s32.totalorder %s36, %s39
    %p48 = scmp.eq.s32.totalorder %s17, 1
    %p49 = por %p47, %p48
    %p50 = scmp.ne.s32.totalorder %s39, %s40
    %p51 = scmp.eq.s32.totalorder %s17, 0
    %p52 = por %p50, %p51
    %p53 = scmp.ne.s32.totalorder %s39, %s40
    %p54 = scmp.eq.s32.totalorder %s18, 1
    %p55 = por %p53, %p54
    %p57 = scmp.ne.s32.totalorder %s40, %s56
    %p58 = scmp.eq.s32.totalorder %s18, 0
    %p59 = por %p57, %p58
    %s61 = sadd.s32 %s60, 1
    %p64 = scmp.eq.s32.totalorder %s12, 1
    %p65 = scmp.ne.s32.totalorder %s60, %s62
    %p66 = scmp.eq.s32.totalorder %s12, 0
    %p67 = por %p65, %p66
    %p68 = scmp.ne.s32.totalorder %s60, %s62
    %p69 = scmp.eq.s32.totalorder %s17, 1
    %p70 = por %p68, %p69
    %p71 = scmp.ne.s32.totalorder %s62, %s63
    %p72 = scmp.eq.s32.totalorder %s17, 0
    %p73 = por %p71, %p72
    %p74 = scmp.ne.s32.totalorder %s62, %s63
    %p75 = scmp.eq.s32.totalorder %s18, 1
    %p76 = por %p74, %p75
    %p78 = scmp.ne.s32.totalorder %s63, %s77
    %p79 = scmp.eq.s32.totalorder %s18, 0
    %p80 = por %p78, %p79
    %s82 = sadd.s32 %s81, 1
    %p85 = scmp.eq.s32.totalorder %s12, 1
    %p86 = scmp.ne.s32.totalorder %s81, %s83
    %p87 = scmp.eq.s32.totalorder %s12, 0
    %p88 = por %p86, %p87
    %p89 = scmp.ne.s32.totalorder %s81, %s83
    %p90 = scmp.eq.s32.totalorder %s17, 1
    %p91 = por %p89, %p90
    %p92 = scmp.ne.s32.totalorder %s83, %s84
    %p93 = scmp.eq.s32.totalorder %s17, 0
    %p94 = por %p92, %p93
    %p95 = scmp.ne.s32.totalorder %s83, %s84
    %p96 = scmp.eq.s32.totalorder %s18, 1
    %p97 = por %p95, %p96
    %p99 = scmp.ne.s32.totalorder %s84, %s98
    %p100 = scmp.eq.s32.totalorder %s18, 0
    %p101 = por %p99, %p100
    %s102 = ssub.s32 %s19, %s31
    %p103 = scmp.eq.s32.totalorder %s102, 0
    %s105 = sadd.s32 %s104, 1
    %s106 = scalar_select %p103, %s104, %s105
    %p109 = pneg %p103
    %p110 = scmp.eq.s32.totalorder %s12, 1
    %p111 = por %p109, %p110
    %p112 = scmp.ne.s32.totalorder %s104, %s107
    %p113 = scmp.eq.s32.totalorder %s12, 0
    %p114 = por %p112, %p113
    %p115 = scmp.ne.s32.totalorder %s104, %s107
    %p116 = scmp.eq.s32.totalorder %s17, 1
    %p117 = por %p115, %p116
    %p118 = scmp.ne.s32.totalorder %s107, %s108
    %p119 = scmp.eq.s32.totalorder %s17, 0
    %p120 = por %p118, %p119
    %p121 = scmp.ne.s32.totalorder %s107, %s108
    %p122 = scmp.eq.s32.totalorder %s18, 1
    %p123 = por %p121, %p122
    %p125 = scmp.ne.s32.totalorder %s108, %s124
    %p126 = scmp.eq.s32.totalorder %s18, 0
    %p127 = por %p125, %p126
    %s128 = ssub.s32 %s19, %s31
    %s129 = ssub.s32 %s20, %s27
    %s130 = sor.u32 %s128, %s129
    %p131 = scmp.eq.s32.totalorder %s130, 0
    %s133 = sadd.s32 %s132, 1
    %s134 = scalar_select %p131, %s132, %s133
    %p137 = pneg %p131
    %p138 = scmp.eq.s32.totalorder %s12, 1
    %p139 = por %p137, %p138
    %p140 = scmp.ne.s32.totalorder %s132, %s135
    %p141 = scmp.eq.s32.totalorder %s12, 0
    %p142 = por %p140, %p141
    %p143 = scmp.ne.s32.totalorder %s132, %s135
    %p144 = scmp.eq.s32.totalorder %s17, 1
    %p145 = por %p143, %p144
    %p146 = scmp.ne.s32.totalorder %s135, %s136
    %p147 = scmp.eq.s32.totalorder %s17, 0
    %p148 = por %p146, %p147
    %p149 = scmp.ne.s32.totalorder %s135, %s136
    %p150 = scmp.eq.s32.totalorder %s18, 1
    %p151 = por %p149, %p150
    %p153 = scmp.ne.s32.totalorder %s136, %s152
    %p154 = scmp.eq.s32.totalorder %s18, 0
    %p155 = por %p153, %p154
    %s156 = ssub.s32 %s19, %s31
    %s157 = ssub.s32 %s20, %s27
    %s158 = sor.u32 %s156, %s157
    %p159 = scmp.eq.s32.totalorder %s158, 0
    %s161 = sadd.s32 %s160, 1
    %s162 = scalar_select %p159, %s160, %s161
    %p165 = pneg %p159
    %p166 = scmp.eq.s32.totalorder %s12, 1
    %p167 = por %p165, %p166
    %p168 = scmp.ne.s32.totalorder %s160, %s163
    %p169 = scmp.eq.s32.totalorder %s12, 0
    %p170 = por %p168, %p169
    %p171 = scmp.ne.s32.totalorder %s160, %s163
    %p172 = scmp.eq.s32.totalorder %s17, 1
    %p173 = por %p171, %p172
    %p174 = scmp.ne.s32.totalorder %s163, %s164
    %p175 = scmp.eq.s32.totalorder %s17, 0
    %p176 = por %p174, %p175
    %p177 = scmp.ne.s32.totalorder %s163, %s164
    %p178 = scmp.eq.s32.totalorder %s18, 1
    %p179 = por %p177, %p178
    %p181 = scmp.ne.s32.totalorder %s164, %s180
    %p182 = scmp.eq.s32.totalorder %s18, 0
    %p183 = por %p181, %p182
    %p184 = scmp.le.s32.totalorder 1, %s12
    %p185 = scmp.lt.s32.totalorder %s12, 3
    %p186 = pnand %p184, %p185
    %p187 = pneg %p186
    // Predicated region
    $region9: #{ctransformer_forward.3} parent=5 // pred_check
      _
    $region10: #{ctransformer_forward.3} parent=5 // pred_check_branch
      %189 = sbr.rel (%p186) target = $region12
    $region11: #{ctransformer_forward.3} parent=5 // pred_region
      %s190 = ssub.s32 %s12, 1
      // Predicated region
      $region13: #{ctransformer_forward.3} parent=11 // pred_check
        %p191 = pneg %p73
      $region14: #{ctransformer_forward.3} parent=11 // pred_check_branch
        %193 = sbr.rel (%p191) target = $region16
      $region15: #{ctransformer_forward.3} parent=11 // pred_region
        _
      $region16: #{ctransformer_forward.3} parent=11 // pred_fallthru
        _
      // Predicated region
      $region17: #{ctransformer_forward.3} parent=11 // pred_check
        %p194 = pneg %p94
      $region18: #{ctransformer_forward.3} parent=11 // pred_check_branch
        %196 = sbr.rel (%p194) target = $region20
      $region19: #{ctransformer_forward.3} parent=11 // pred_region
        _
      $region20: #{ctransformer_forward.3} parent=11 // pred_fallthru
        _
    $region12: #{ctransformer_forward.3} parent=5 // pred_fallthru
      _
    %p197 = scmp.lt.s32.totalorder %s12, 2
    // Predicated region
    $region21: #{ctransformer_forward.3} parent=5 // pred_check
      %p198 = pneg %p197
    $region22: #{ctransformer_forward.3} parent=5 // pred_check_branch
      %200 = sbr.rel (%p198) target = $region24
    $region23: #{ctransformer_forward.3} parent=5 // pred_region
      // Predicated region
      $region25: #{ctransformer_forward.3} parent=23 // pred_check
        %p201 = pneg %p46
      $region26: #{ctransformer_forward.3} parent=23 // pred_check_branch
        %203 = sbr.rel (%p201) target = $region28
      $region27: #{ctransformer_forward.3} parent=23 // pred_region
        %s204 = smul.u32 2, %s20
        %p205 = scmp.lt.s32.totalorder %s19, 1
        %s206 = scalar_select %p205, %s19, 1
        %p207 = scmp.lt.s32.totalorder %s204, 1
        %s208 = scalar_select %p207, %s204, 1
        %s209 = smul.addr %s206, 2
        %s210 = sadd.s32 %s208, %s209
        %s211 = smul.addr %s210, 8
        %s212 = scalar_lea.vmem %s0, %s211
        %s213 = smul.u32 2, %s20
      $region28: #{ctransformer_forward.3} parent=23 // pred_fallthru
        _
      // Predicated region
      $region29: #{ctransformer_forward.3} parent=23 // pred_check
        %p214 = pneg %p114
      $region30: #{ctransformer_forward.3} parent=23 // pred_check_branch
        %216 = sbr.rel (%p214) target = $region32
      $region31: #{ctransformer_forward.3} parent=23 // pred_region
        %p217 = scmp.lt.s32.totalorder %s19, 1
        %s218 = scalar_select %p217, %s19, 1
        %s219 = smul.addr %s218, 4
        %s220 = smul.addr %s219, 4
        %s221 = scalar_lea.vmem %s3, %s220
      $region32: #{ctransformer_forward.3} parent=23 // pred_fallthru
        _
    $region24: #{ctransformer_forward.3} parent=5 // pred_fallthru
      _
    %p222 = scmp.le.s32.totalorder 1, %s12
    %p223 = scmp.lt.s32.totalorder %s12, 3
    %p224 = pnand %p222, %p223
    %p225 = pneg %p224
    // Predicated region
    $region33: #{ctransformer_forward.3} parent=5 // pred_check
      _
    $region34: #{ctransformer_forward.3} parent=5 // pred_check_branch
      %227 = sbr.rel (%p224) target = $region36
    $region35: #{ctransformer_forward.3} parent=5 // pred_region
      %s228 = ssub.s32 %s12, 1
      %s229 = smul.u32 2, %s22
      %p230 = scmp.lt.s32.totalorder %s21, 1
      %s231 = scalar_select %p230, %s21, 1
      %p232 = scmp.lt.s32.totalorder %s229, 1
      %s233 = scalar_select %p232, %s229, 1
      %s234 = smul.addr %s231, 2
      %s235 = sadd.s32 %s233, %s234
      %s236 = smul.addr %s235, 8
      %s237 = scalar_lea.vmem %s0, %s236
      %p238 = pneg %p52
      %p239 = pneg %p49
      %p240 = pneg %p73
      %p241 = pneg %p70
      %p242 = pneg %p94
      %p243 = pneg %p91
      %p244 = scmp.lt.s32.totalorder %s21, 1
      %s245 = scalar_select %p244, %s21, 1
      %s246 = smul.addr %s245, 4
      %s247 = smul.addr %s246, 4
      %s248 = scalar_lea.vmem %s3, %s247
      %p249 = pneg %p120
      %p250 = pneg %p117
      %p251 = pneg %p148
      %p252 = pneg %p145
      %s253 = smul.u32 2, %s22
      %p254 = scmp.lt.s32.totalorder %s21, 1
      %s255 = scalar_select %p254, %s21, 1
      %p256 = scmp.lt.s32.totalorder %s253, 1
      %s257 = scalar_select %p256, %s253, 1
      %s258 = smul.addr %s255, 2
      %s259 = sadd.s32 %s257, %s258
      %s260 = smul.addr %s259, 8
      %s261 = scalar_lea.vmem %s4, %s260
      %p262 = pneg %p176
      %p263 = pneg %p173
      %s264 = smul.u32 2, %s22
      %p265 = scmp.lt.s32.totalorder %s21, 1
      %s266 = scalar_select %p265, %s21, 1
      %p267 = scmp.lt.s32.totalorder %s264, 1
      %s268 = scalar_select %p267, %s264, 1
      %s269 = smul.addr %s266, 2
      %s270 = sadd.s32 %s268, %s269
      %s271 = smul.addr %s270, 8
      %s272 = scalar_lea.vmem %s5, %s271
      %s273 = smul.u32 2, %s22
      %p274 = scmp.lt.s32.totalorder %s21, 1
      %s275 = scalar_select %p274, %s21, 1
      %p276 = scmp.lt.s32.totalorder %s273, 1
      %s277 = scalar_select %p276, %s273, 1
      %s278 = smul.addr %s275, 2
      %s279 = sadd.s32 %s277, %s278
      %s280 = smul.addr %s279, 8
      %s281 = scalar_lea.vmem %s0, %s280
      %s282 = smul.u32 2, %s22
      %p283 = scmp.lt.s32.totalorder %s21, 1
      %s284 = scalar_select %p283, %s21, 1
      %s285 = smul.addr %s284, 4
      %s286 = smul.addr %s285, 4
      %s287 = scalar_lea.vmem %s3, %s286
      %s288 = smul.u32 2, %s22
      %p289 = scmp.lt.s32.totalorder %s21, 1
      %s290 = scalar_select %p289, %s21, 1
      %p291 = scmp.lt.s32.totalorder %s288, 1
      %s292 = scalar_select %p291, %s288, 1
      %s293 = smul.addr %s290, 2
      %s294 = sadd.s32 %s292, %s293
      %s295 = smul.addr %s294, 8
      %s296 = scalar_lea.vmem %s4, %s295
      %s297 = smul.u32 2, %s22
      %s298 = smul.u32 2, %s22
      %p299 = scmp.lt.s32.totalorder %s21, 1
      %s300 = scalar_select %p299, %s21, 1
      %p301 = scmp.lt.s32.totalorder %s298, 1
      %s302 = scalar_select %p301, %s298, 1
      %s303 = smul.addr %s300, 2
      %s304 = sadd.s32 %s302, %s303
      %s305 = smul.addr %s304, 8
      %s306 = scalar_lea.vmem %s5, %s305
      %s307 = smul.u32 2, %s22
      %v309 = vld [vmem:[%s281] sm:$0xff]
      %v310 = vld [vmem:[%s281 + $0x8] sm:$0xff]
      %v311 = vld [vmem:[%s1] sm:$0xf]
      %v312 = vld [vmem:[%s2] sm:$0x1]
      %314 = vset.pattern.permute.xlu0 0
      %315 = vperm.xlu0 %314, %v309
      %v316 = vpop.permute.xlu0 %315
      %319 = vset.pattern.permute.xlu0 0
      %320 = vperm.xlu0 %319, %v310
      %v321 = vpop.permute.xlu0 %320
      %v323 = vlaneseq
      %v324 = vshrl.u32 %v323, 7
      %v325 = vsub.s32 0, %v324
      %v326 = vrot.slane %v311, %v325
      %v327 = vmul.f32 %v316, %v326
      %v328 = vmul.f32 %v321, %v326
      %v330 = vlaneseq
      %v331 = vshrl.u32 %v330, 7
      %v332 = vsub.s32 0, %v331
      %v333 = vrot.slane %v312, %v332
      %v335 = vadd.f32 %v333, %v327
      %v336 = vadd.f32 %v333, %v328
      %337 = vset.pattern.permute.xlu0 1
      %338 = vperm.xlu0 %337, %v309
      %v339 = vpop.permute.xlu0 %338
      %341 = vset.pattern.permute.xlu0 1
      %342 = vperm.xlu0 %341, %v310
      %v343 = vpop.permute.xlu0 %342
      %v345 = vlaneseq
      %v346 = vshrl.u32 %v345, 7
      %v347 = vsub.s32 1, %v346
      %v348 = vrot.slane %v311, %v347
      %v349 = vmul.f32 %v339, %v348
      %v350 = vmul.f32 %v343, %v348
      %v351 = vadd.f32 %v335, %v349
      %v352 = vadd.f32 %v336, %v350
      %353 = vset.pattern.permute.xlu0 2
      %354 = vperm.xlu0 %353, %v309
      %v355 = vpop.permute.xlu0 %354
      %357 = vset.pattern.permute.xlu0 2
      %358 = vperm.xlu0 %357, %v310
      %v359 = vpop.permute.xlu0 %358
      %v361 = vlaneseq
      %v362 = vshrl.u32 %v361, 7
      %v363 = vsub.s32 2, %v362
      %v364 = vrot.slane %v311, %v363
      %v365 = vmul.f32 %v355, %v364
      %v366 = vmul.f32 %v359, %v364
      %v367 = vadd.f32 %v351, %v365
      %v368 = vadd.f32 %v352, %v366
      %369 = vset.pattern.permute.xlu0 3
      %370 = vperm.xlu0 %369, %v309
      %v371 = vpop.permute.xlu0 %370
      %373 = vset.pattern.permute.xlu0 3
      %374 = vperm.xlu0 %373, %v310
      %v375 = vpop.permute.xlu0 %374
      %v377 = vlaneseq
      %v378 = vshrl.u32 %v377, 7
      %v379 = vsub.s32 3, %v378
      %v380 = vrot.slane %v311, %v379
      %v381 = vmul.f32 %v371, %v380
      %v382 = vmul.f32 %v375, %v380
      %v383 = vadd.f32 %v367, %v381
      %v384 = vadd.f32 %v368, %v382
      %vm385 = vcmask 261120
      %386 = vst.msk [vmem:[%s296] sm:$0xff] %vm385, %v383
      %387 = vst.msk [vmem:[%s296 + $0x8] sm:$0xff] %vm385, %v384
      %v388 = vpack.c.bf16 %v384, %v383
      %v389 = vld [vmem:[%s287] sm:$0xf]
      %v390 = vld [vmem:[%s287 + $0x4] sm:$0xf]
      %v391 = vld [vmem:[%s287 + $0x8] sm:$0xf]
      %v392 = vld [vmem:[%s287 + $0xc] sm:$0xf]
      %v397 = vunpack.c.l.b16 %v389
      %v398 = vunpack.c.l.b16 %v390
      %v399 = vunpack.c.l.b16 %v391
      %v400 = vunpack.c.l.b16 %v392
      %v401 = vpack.c.b16 %v398, %v397
      %v402 = vpack.c.b16 %v400, %v399
      %v406 = vsel %vm385, %v388, 0
      %408 = vmatprep.subr.bf16.mxu0 0
      %409 = vmatpush1.bf16.msra.mxu0 %v401
      %410 = vmatprep.subr.bf16.mxu0 0
      %411 = vmatpush1.bf16.msra.mxu0 %v402
      %412 = vmatprep.subr.bf16.mxu0 0
      %413 = vmatpush1.bf16.msra.mxu0 0
      %414 = vmatprep.subr.bf16.mxu0 0
      %415 = vmatpush1.bf16.msra.mxu0 0
      %416 = vmatprep.subr.bf16.mxu0 0
      %417 = vmatpush1.bf16.msra.mxu0 0
      %418 = vmatprep.subr.bf16.mxu0 0
      %419 = vmatpush1.bf16.msra.mxu0 0
      %420 = vmatprep.subr.bf16.mxu0 0
      %421 = vmatpush1.bf16.msra.mxu0 0
      %422 = vmatprep.subr.bf16.mxu0 0
      %423 = vmatpush1.bf16.msra.mxu0 0
      %424 = vmatprep.subr.bf16.mxu0 0
      %425 = vmatpush1.bf16.msra.mxu0 0
      %426 = vmatprep.subr.bf16.mxu0 0
      %427 = vmatpush1.bf16.msra.mxu0 0
      %428 = vmatprep.subr.bf16.mxu0 0
      %429 = vmatpush1.bf16.msra.mxu0 0
      %430 = vmatprep.subr.bf16.mxu0 0
      %431 = vmatpush1.bf16.msra.mxu0 0
      %432 = vmatprep.subr.bf16.mxu0 0
      %433 = vmatpush1.bf16.msra.mxu0 0
      %434 = vmatprep.subr.bf16.mxu0 0
      %435 = vmatpush1.bf16.msra.mxu0 0
      %436 = vmatprep.subr.bf16.mxu0 0
      %437 = vmatpush1.bf16.msra.mxu0 0
      %438 = vmatprep.subr.bf16.mxu0 0
      %439 = vmatpush1.bf16.msra.mxu0 0
      %440 = vmatprep.mubr.bf16.mxu0 0
      %441 = vmatmul.mubr.bf16.gmra.mrb[0].mxu0 %v406
      %v442 = vpop.f32.mrb[0].mxu0
      %v443 = vadd.f32 0.0, %v442
      %v444 = vpop.f32.mrb[0].mxu0
      %v445 = vpop.f32.mrb[0].mxu0
      %v446 = vadd.f32 0.0, %v445
      %v447 = vpop.f32.mrb[0].mxu0
      %448 = vdwg.mxu0
      %vm449 = vcmask 785408
      %450 = vst.msk [vmem:[%s306] sm:$0xff] %vm449, %v443
      %451 = vst.msk [vmem:[%s306 + $0x8] sm:$0xff] %vm449, %v446
      %s452 = smul.u32 2, %s22
      %p453 = scmp.lt.s32.totalorder %s21, 1
      %s454 = scalar_select %p453, %s21, 1
      %p455 = scmp.lt.s32.totalorder %s452, 1
      %s456 = scalar_select %p455, %s452, 1
      %s457 = smul.addr %s454, 2
      %s458 = sadd.s32 %s456, %s457
      %s459 = smul.addr %s458, 8
      %s460 = scalar_lea.vmem %s4, %s459
      %s461 = smul.u32 2, %s22
      %p462 = scmp.lt.s32.totalorder %s21, 1
      %s463 = scalar_select %p462, %s21, 1
      %p464 = scmp.lt.s32.totalorder %s461, 1
      %s465 = scalar_select %p464, %s461, 1
      %s466 = smul.addr %s463, 2
      %s467 = sadd.s32 %s465, %s466
      %s468 = smul.addr %s467, 8
      %s469 = scalar_lea.vmem %s5, %s468
      // Predicated region
      $region37: #{ctransformer_forward.3} parent=35 // pred_check
        %p470 = pneg %p145
      $region38: #{ctransformer_forward.3} parent=35 // pred_check_branch
        %472 = sbr.rel (%p470) target = $region40
      $region39: #{ctransformer_forward.3} parent=35 // pred_region
        %s473 = smul.u32 2, %s22
      $region40: #{ctransformer_forward.3} parent=35 // pred_fallthru
        _
      // Predicated region
      $region41: #{ctransformer_forward.3} parent=35 // pred_check
        %p474 = pneg %p173
      $region42: #{ctransformer_forward.3} parent=35 // pred_check_branch
        %476 = sbr.rel (%p474) target = $region44
      $region43: #{ctransformer_forward.3} parent=35 // pred_region
        %s477 = smul.u32 2, %s22
      $region44: #{ctransformer_forward.3} parent=35 // pred_fallthru
        _
    $region36: #{ctransformer_forward.3} parent=5 // pred_fallthru
      _
    %p478 = scmp.le.s32.totalorder 2, %s12
    // Predicated region
    $region45: #{ctransformer_forward.3} parent=5 // pred_check
      %p479 = pneg %p478
    $region46: #{ctransformer_forward.3} parent=5 // pred_check_branch
      %481 = sbr.rel (%p479) target = $region48
    $region47: #{ctransformer_forward.3} parent=5 // pred_region
      %s482 = ssub.s32 %s12, 2
      // Predicated region
      $region49: #{ctransformer_forward.3} parent=47 // pred_check
        %p483 = pneg %p151
      $region50: #{ctransformer_forward.3} parent=47 // pred_check_branch
        %485 = sbr.rel (%p483) target = $region52
      $region51: #{ctransformer_forward.3} parent=47 // pred_region
        %s486 = smul.u32 2, %s24
        %p487 = scmp.lt.s32.totalorder %s23, 1
        %s488 = scalar_select %p487, %s23, 1
        %p489 = scmp.lt.s32.totalorder %s486, 1
        %s490 = scalar_select %p489, %s486, 1
        %s491 = smul.addr %s488, 2
        %s492 = sadd.s32 %s490, %s491
        %s493 = smul.addr %s492, 8
        %s494 = scalar_lea.vmem %s4, %s493
      $region52: #{ctransformer_forward.3} parent=47 // pred_fallthru
        _
      // Predicated region
      $region53: #{ctransformer_forward.3} parent=47 // pred_check
        %p495 = pneg %p179
      $region54: #{ctransformer_forward.3} parent=47 // pred_check_branch
        %497 = sbr.rel (%p495) target = $region56
      $region55: #{ctransformer_forward.3} parent=47 // pred_region
        %s498 = smul.u32 2, %s24
        %p499 = scmp.lt.s32.totalorder %s23, 1
        %s500 = scalar_select %p499, %s23, 1
        %p501 = scmp.lt.s32.totalorder %s498, 1
        %s502 = scalar_select %p501, %s498, 1
        %s503 = smul.addr %s500, 2
        %s504 = sadd.s32 %s502, %s503
        %s505 = smul.addr %s504, 8
        %s506 = scalar_lea.vmem %s5, %s505
      $region56: #{ctransformer_forward.3} parent=47 // pred_fallthru
        _
    $region48: #{ctransformer_forward.3} parent=5 // pred_fallthru
      _
  $region6: #{ctransformer_forward.3} parent=0 // loop_footer
    %s16 = sadd.s32 1, %s12
  $region7: #{ctransformer_forward.3} parent=0 // loop_footer_branch
    %11 = sbr.rel target = $region3
  $region8: #{ctransformer_forward.3} parent=0 // loop_exit
    _

// kernel: ctransformer_forward.5
$region0: #{ctransformer_forward.5}
  #allocation0 [shape = 'u32[]', space=smem, size = 0x4, offset = 0x4, fixed_abs, tag = 'smem constant byte address 0x4 - core index']
  #allocation1 [shape = 'u32[144,128]{1,0:T(1,128)}', space=vmem, size = 0x12000, scoped, tag = 'internal scratch']
  %s0 = inlined_call_operand.vmem [shape: f32[2,16,32], index: 0, kind: input, shape index: {}]
  %s1 = inlined_call_operand.vmem [shape: f32[2,16,32], index: 1, kind: input, shape index: {}]
  %s2 = inlined_call_operand.vmem [shape: bf16[2,32,32], index: 2, kind: input, shape index: {}]
  %s3 = inlined_call_operand.hbm [shape: f32[2,16,32], index: 3, kind: output, shape index: {}]
  %s4 = sld [smem:[#allocation0]]
  $region45: #{ctransformer_forward.5} parent=0
    _
  %s6 = ssub.s32 1, %s4
  %s7 = scalar_select 0, %s6, %s4
  $region1: #{ctransformer_forward.5} parent=0
    #allocation2 [shape = 'u8[16384]{0}', space=vmem, size = 0x4000, scoped, tag = 'output window, operand 0']
    #allocation3 [shape = 's32[2]{0}', space=sflag, size = 0x8, scoped, tag = 'scoped memory for ctransformer_forward.5']
    %8 = vsyncpa [#allocation3], 0
    %s9 = scalar_lea.sflag [#allocation3], 1
    %10 = vsyncpa %s9, 0
    loop: start=0, step=1, limit=4
    $region2: #{ctransformer_forward.5} parent=1 // loop_pre_header
      _
    $region3: #{ctransformer_forward.5} parent=1 // loop_header
      %s12 = sphi 0, %s16
      %p13 = scmp.ge.s32.totalorder %s12, 4
      %s19 = sphi 0, %s31
      %s20 = sphi 0, %s27
      %s21 = sphi 0, %s19
      %s22 = sphi 0, %s20
      %s23 = sphi 0, %s21
      %s24 = sphi 0, %s22
      %s36 = sphi 0, %s38
      %s39 = sphi 0, %s36
      %s40 = sphi 0, %s39
      %s56 = sphi 0, %s40
      %s64 = sphi 0, %s66
      %s67 = sphi 0, %s64
      %s68 = sphi 0, %s67
      %s84 = sphi 0, %s68
      %s90 = sphi 0, %s92
      %s93 = sphi 0, %s90
      %s94 = sphi 0, %s93
      %s110 = sphi 0, %s94
      %s118 = sphi 0, %s120
      %s121 = sphi 0, %s118
      %s122 = sphi 0, %s121
      %s138 = sphi 0, %s122
    $region4: #{ctransformer_forward.5} parent=1 // loop_header_branch
      %15 = sbr.rel (%p13) target = $region8
    $region5: #{ctransformer_forward.5} parent=1 // loop_body
      %s17 = ssub.s32 %s12, 1
      %s18 = ssub.s32 %s12, 2
      %s25 = sadd.s32 1, %s20
      %p26 = scmp.ge.s32.totalorder %s25, 1
      %s27 = scalar_select %p26, 0, %s25
      %s28 = sadd.s32 1, %s19
      %s29 = scalar_select %p26, %s28, %s19
      %p30 = scmp.ge.s32.totalorder %s29, 2
      %s31 = scalar_select %p30, 0, %s29
      %s32 = ssub.s32 %s19, %s31
      %s33 = ssub.s32 %s20, %s27
      %s34 = sor.u32 %s32, %s33
      %p35 = scmp.eq.s32.totalorder %s34, 0
      %s37 = sadd.s32 %s36, 1
      %s38 = scalar_select %p35, %s36, %s37
      %p41 = pneg %p35
      %p42 = scmp.eq.s32.totalorder %s12, 1
      %p43 = por %p41, %p42
      %p44 = scmp.ne.s32.totalorder %s36, %s39
      %p45 = scmp.eq.s32.totalorder %s12, 0
      %p46 = por %p44, %p45
      %p47 = scmp.ne.s32.totalorder %s36, %s39
      %p48 = scmp.eq.s32.totalorder %s17, 1
      %p49 = por %p47, %p48
      %p50 = scmp.ne.s32.totalorder %s39, %s40
      %p51 = scmp.eq.s32.totalorder %s17, 0
      %p52 = por %p50, %p51
      %p53 = scmp.ne.s32.totalorder %s39, %s40
      %p54 = scmp.eq.s32.totalorder %s18, 1
      %p55 = por %p53, %p54
      %p57 = scmp.ne.s32.totalorder %s40, %s56
      %p58 = scmp.eq.s32.totalorder %s18, 0
      %p59 = por %p57, %p58
      %s60 = ssub.s32 %s19, %s31
      %s61 = ssub.s32 %s20, %s27
      %s62 = sor.u32 %s60, %s61
      %p63 = scmp.eq.s32.totalorder %s62, 0
      %s65 = sadd.s32 %s64, 1
      %s66 = scalar_select %p63, %s64, %s65
      %p69 = pneg %p63
      %p70 = scmp.eq.s32.totalorder %s12, 1
      %p71 = por %p69, %p70
      %p72 = scmp.ne.s32.totalorder %s64, %s67
      %p73 = scmp.eq.s32.totalorder %s12, 0
      %p74 = por %p72, %p73
      %p75 = scmp.ne.s32.totalorder %s64, %s67
      %p76 = scmp.eq.s32.totalorder %s17, 1
      %p77 = por %p75, %p76
      %p78 = scmp.ne.s32.totalorder %s67, %s68
      %p79 = scmp.eq.s32.totalorder %s17, 0
      %p80 = por %p78, %p79
      %p81 = scmp.ne.s32.totalorder %s67, %s68
      %p82 = scmp.eq.s32.totalorder %s18, 1
      %p83 = por %p81, %p82
      %p85 = scmp.ne.s32.totalorder %s68, %s84
      %p86 = scmp.eq.s32.totalorder %s18, 0
      %p87 = por %p85, %p86
      %s88 = ssub.s32 %s19, %s31
      %p89 = scmp.eq.s32.totalorder %s88, 0
      %s91 = sadd.s32 %s90, 1
      %s92 = scalar_select %p89, %s90, %s91
      %p95 = pneg %p89
      %p96 = scmp.eq.s32.totalorder %s12, 1
      %p97 = por %p95, %p96
      %p98 = scmp.ne.s32.totalorder %s90, %s93
      %p99 = scmp.eq.s32.totalorder %s12, 0
      %p100 = por %p98, %p99
      %p101 = scmp.ne.s32.totalorder %s90, %s93
      %p102 = scmp.eq.s32.totalorder %s17, 1
      %p103 = por %p101, %p102
      %p104 = scmp.ne.s32.totalorder %s93, %s94
      %p105 = scmp.eq.s32.totalorder %s17, 0
      %p106 = por %p104, %p105
      %p107 = scmp.ne.s32.totalorder %s93, %s94
      %p108 = scmp.eq.s32.totalorder %s18, 1
      %p109 = por %p107, %p108
      %p111 = scmp.ne.s32.totalorder %s94, %s110
      %p112 = scmp.eq.s32.totalorder %s18, 0
      %p113 = por %p111, %p112
      %s114 = ssub.s32 %s19, %s31
      %s115 = ssub.s32 %s20, %s27
      %s116 = sor.u32 %s114, %s115
      %p117 = scmp.eq.s32.totalorder %s116, 0
      %s119 = sadd.s32 %s118, 1
      %s120 = scalar_select %p117, %s118, %s119
      %p123 = pneg %p117
      %p124 = scmp.eq.s32.totalorder %s12, 1
      %p125 = por %p123, %p124
      %p126 = scmp.ne.s32.totalorder %s118, %s121
      %p127 = scmp.eq.s32.totalorder %s12, 0
      %p128 = por %p126, %p127
      %p129 = scmp.ne.s32.totalorder %s118, %s121
      %p130 = scmp.eq.s32.totalorder %s17, 1
      %p131 = por %p129, %p130
      %p132 = scmp.ne.s32.totalorder %s121, %s122
      %p133 = scmp.eq.s32.totalorder %s17, 0
      %p134 = por %p132, %p133
      %p135 = scmp.ne.s32.totalorder %s121, %s122
      %p136 = scmp.eq.s32.totalorder %s18, 1
      %p137 = por %p135, %p136
      %p139 = scmp.ne.s32.totalorder %s122, %s138
      %p140 = scmp.eq.s32.totalorder %s18, 0
      %p141 = por %p139, %p140
      %p142 = scmp.le.s32.totalorder 1, %s12
      %p143 = scmp.lt.s32.totalorder %s12, 3
      %p144 = pnand %p142, %p143
      %p145 = pneg %p144
      // Predicated region
      $region9: #{ctransformer_forward.5} parent=5 // pred_check
        _
      $region10: #{ctransformer_forward.5} parent=5 // pred_check_branch
        %147 = sbr.rel (%p144) target = $region12
      $region11: #{ctransformer_forward.5} parent=5 // pred_region
        %s148 = ssub.s32 %s12, 1
      $region12: #{ctransformer_forward.5} parent=5 // pred_fallthru
        _
      %p149 = scmp.lt.s32.totalorder %s12, 2
      // Predicated region
      $region13: #{ctransformer_forward.5} parent=5 // pred_check
        %p150 = pneg %p149
      $region14: #{ctransformer_forward.5} parent=5 // pred_check_branch
        %152 = sbr.rel (%p150) target = $region16
      $region15: #{ctransformer_forward.5} parent=5 // pred_region
        // Predicated region
        $region17: #{ctransformer_forward.5} parent=15 // pred_check
          %p153 = pneg %p46
        $region18: #{ctransformer_forward.5} parent=15 // pred_check_branch
          %155 = sbr.rel (%p153) target = $region20
        $region19: #{ctransformer_forward.5} parent=15 // pred_region
          %s156 = smul.u32 2, %s20
          %p157 = scmp.lt.s32.totalorder %s19, 1
          %s158 = scalar_select %p157, %s19, 1
          %p159 = scmp.lt.s32.totalorder %s156, 1
          %s160 = scalar_select %p159, %s156, 1
          %s161 = smul.addr %s158, 2
          %s162 = sadd.s32 %s160, %s161
          %s163 = smul.addr %s162, 8
          %s164 = scalar_lea.vmem %s0, %s163
          %s165 = smul.u32 2, %s20
        $region20: #{ctransformer_forward.5} parent=15 // pred_fallthru
          _
        // Predicated region
        $region21: #{ctransformer_forward.5} parent=15 // pred_check
          %p166 = pneg %p74
        $region22: #{ctransformer_forward.5} parent=15 // pred_check_branch
          %168 = sbr.rel (%p166) target = $region24
        $region23: #{ctransformer_forward.5} parent=15 // pred_region
          %s169 = smul.u32 2, %s20
          %p170 = scmp.lt.s32.totalorder %s19, 1
          %s171 = scalar_select %p170, %s19, 1
          %p172 = scmp.lt.s32.totalorder %s169, 1
          %s173 = scalar_select %p172, %s169, 1
          %s174 = smul.addr %s171, 2
          %s175 = sadd.s32 %s173, %s174
          %s176 = smul.addr %s175, 8
          %s177 = scalar_lea.vmem %s1, %s176
          %s178 = smul.u32 2, %s20
        $region24: #{ctransformer_forward.5} parent=15 // pred_fallthru
          _
        // Predicated region
        $region25: #{ctransformer_forward.5} parent=15 // pred_check
          %p179 = pneg %p100
        $region26: #{ctransformer_forward.5} parent=15 // pred_check_branch
          %181 = sbr.rel (%p179) target = $region28
        $region27: #{ctransformer_forward.5} parent=15 // pred_region
          %p182 = scmp.lt.s32.totalorder %s19, 1
          %s183 = scalar_select %p182, %s19, 1
          %s184 = smul.addr %s183, 4
          %s185 = smul.addr %s184, 4
          %s186 = scalar_lea.vmem %s2, %s185
        $region28: #{ctransformer_forward.5} parent=15 // pred_fallthru
          _
      $region16: #{ctransformer_forward.5} parent=5 // pred_fallthru
        _
      %p187 = scmp.le.s32.totalorder 1, %s12
      %p188 = scmp.lt.s32.totalorder %s12, 3
      %p189 = pnand %p187, %p188
      %p190 = pneg %p189
      // Predicated region
      $region29: #{ctransformer_forward.5} parent=5 // pred_check
        _
      $region30: #{ctransformer_forward.5} parent=5 // pred_check_branch
        %192 = sbr.rel (%p189) target = $region32
      $region31: #{ctransformer_forward.5} parent=5 // pred_region
        %s193 = ssub.s32 %s12, 1
        %s194 = smul.u32 2, %s22
        %p195 = scmp.lt.s32.totalorder %s21, 1
        %s196 = scalar_select %p195, %s21, 1
        %p197 = scmp.lt.s32.totalorder %s194, 1
        %s198 = scalar_select %p197, %s194, 1
        %s199 = smul.addr %s196, 2
        %s200 = sadd.s32 %s198, %s199
        %s201 = smul.addr %s200, 8
        %s202 = scalar_lea.vmem %s0, %s201
        %p203 = pneg %p52
        %p204 = pneg %p49
        %s205 = smul.u32 2, %s22
        %p206 = scmp.lt.s32.totalorder %s21, 1
        %s207 = scalar_select %p206, %s21, 1
        %p208 = scmp.lt.s32.totalorder %s205, 1
        %s209 = scalar_select %p208, %s205, 1
        %s210 = smul.addr %s207, 2
        %s211 = sadd.s32 %s209, %s210
        %s212 = smul.addr %s211, 8
        %s213 = scalar_lea.vmem %s1, %s212
        %p214 = pneg %p80
        %p215 = pneg %p77
        %p216 = scmp.lt.s32.totalorder %s21, 1
        %s217 = scalar_select %p216, %s21, 1
        %s218 = smul.addr %s217, 4
        %s219 = smul.addr %s218, 4
        %s220 = scalar_lea.vmem %s2, %s219
        %p221 = pneg %p106
        %p222 = pneg %p103
        %p223 = pneg %p134
        %p224 = pneg %p131
        %s225 = sand.u32 %s121, 1
        %s226 = scalar_lea.sflag [#allocation3], %s225
        %s227 = sand.u32 %s121, 1
        %s228 = smul.addr %s227, 16
        %s229 = scalar_lea.vmem [#allocation2], %s228
        %s230 = smul.u32 2, %s22
        %p231 = scmp.lt.s32.totalorder %s21, 1
        %s232 = scalar_select %p231, %s21, 1
        %p233 = scmp.lt.s32.totalorder %s230, 1
        %s234 = scalar_select %p233, %s230, 1
        %s235 = smul.addr %s232, 2
        %s236 = sadd.s32 %s234, %s235
        %s237 = smul.addr %s236, 8
        %s238 = scalar_lea.vmem %s0, %s237
        %s239 = smul.u32 2, %s22
        %s240 = smul.u32 2, %s22
        %p241 = scmp.lt.s32.totalorder %s21, 1
        %s242 = scalar_select %p241, %s21, 1
        %p243 = scmp.lt.s32.totalorder %s240, 1
        %s244 = scalar_select %p243, %s240, 1
        %s245 = smul.addr %s242, 2
        %s246 = sadd.s32 %s244, %s245
        %s247 = smul.addr %s246, 8
        %s248 = scalar_lea.vmem %s1, %s247
        %s249 = smul.u32 2, %s22
        %p250 = scmp.lt.s32.totalorder %s21, 1
        %s251 = scalar_select %p250, %s21, 1
        %s252 = smul.addr %s251, 4
        %s253 = smul.addr %s252, 4
        %s254 = scalar_lea.vmem %s2, %s253
        %s255 = smul.u32 2, %s22
        %v257 = vld [vmem:[%s238] sm:$0xff]
        %v258 = vld [vmem:[%s238 + $0x8] sm:$0xff]
        %v259 = vpack.c.bf16 %v258, %v257
        %v260 = vld [vmem:[%s254] sm:$0xf]
        %v261 = vld [vmem:[%s254 + $0x4] sm:$0xf]
        %v262 = vld [vmem:[%s254 + $0x8] sm:$0xf]
        %v263 = vld [vmem:[%s254 + $0xc] sm:$0xf]
        %v264 = vld [vmem:[%s248] sm:$0xff]
        %v265 = vld [vmem:[%s248 + $0x8] sm:$0xff]
        %v270 = vunpack.c.l.b16 %v260
        %v271 = vunpack.c.l.b16 %v261
        %v272 = vunpack.c.l.b16 %v262
        %v273 = vunpack.c.l.b16 %v263
        %v274 = vpack.c.b16 %v271, %v270
        %v275 = vpack.c.b16 %v273, %v272
        %vm278 = vcmask 261120
        %v280 = vsel %vm278, %v259, 0
        %282 = vmatprep.subr.bf16.mxu0 0
        %283 = vmatpush1.bf16.msra.mxu0 %v274
        %284 = vmatprep.subr.bf16.mxu0 0
        %285 = vmatpush1.bf16.msra.mxu0 %v275
        %286 = vmatprep.subr.bf16.mxu0 0
        %287 = vmatpush1.bf16.msra.mxu0 0
        %288 = vmatprep.subr.bf16.mxu0 0
        %289 = vmatpush1.bf16.msra.mxu0 0
        %290 = vmatprep.subr.bf16.mxu0 0
        %291 = vmatpush1.bf16.msra.mxu0 0
        %292 = vmatprep.subr.bf16.mxu0 0
        %293 = vmatpush1.bf16.msra.mxu0 0
        %294 = vmatprep.subr.bf16.mxu0 0
        %295 = vmatpush1.bf16.msra.mxu0 0
        %296 = vmatprep.subr.bf16.mxu0 0
        %297 = vmatpush1.bf16.msra.mxu0 0
        %298 = vmatprep.subr.bf16.mxu0 0
        %299 = vmatpush1.bf16.msra.mxu0 0
        %300 = vmatprep.subr.bf16.mxu0 0
        %301 = vmatpush1.bf16.msra.mxu0 0
        %302 = vmatprep.subr.bf16.mxu0 0
        %303 = vmatpush1.bf16.msra.mxu0 0
        %304 = vmatprep.subr.bf16.mxu0 0
        %305 = vmatpush1.bf16.msra.mxu0 0
        %306 = vmatprep.subr.bf16.mxu0 0
        %307 = vmatpush1.bf16.msra.mxu0 0
        %308 = vmatprep.subr.bf16.mxu0 0
        %309 = vmatpush1.bf16.msra.mxu0 0
        %310 = vmatprep.subr.bf16.mxu0 0
        %311 = vmatpush1.bf16.msra.mxu0 0
        %312 = vmatprep.subr.bf16.mxu0 0
        %313 = vmatpush1.bf16.msra.mxu0 0
        %314 = vmatprep.mubr.bf16.mxu0 0
        %315 = vmatmul.mubr.bf16.gmra.mrb[0].mxu0 %v280
        %v316 = vpop.f32.mrb[0].mxu0
        %v317 = vadd.f32 %v264, %v316
        %v318 = vpop.f32.mrb[0].mxu0
        %v319 = vpop.f32.mrb[0].mxu0
        %v320 = vadd.f32 %v265, %v319
        %v321 = vpop.f32.mrb[0].mxu0
        %322 = vdwg.mxu0
        %323 = vst.msk [vmem:[%s229] sm:$0xff] %vm278, %v317
        %324 = vst.msk [vmem:[%s229 + $0x8] sm:$0xff] %vm278, %v320
        %s325 = sand.u32 %s121, 1
        %s326 = scalar_lea.sflag [#allocation3], %s325
        %s327 = sand.u32 %s121, 1
        %s328 = smul.addr %s327, 16
        %s329 = scalar_lea.vmem [#allocation2], %s328
        // Predicated region
        $region33: #{ctransformer_forward.5} parent=31 // pred_check
          %p330 = pneg %p131
        $region34: #{ctransformer_forward.5} parent=31 // pred_check_branch
          %332 = sbr.rel (%p330) target = $region36
        $region35: #{ctransformer_forward.5} parent=31 // pred_region
          %s333 = smul.u32 2, %s22
          %s335 = ssub.s32 256, 256
          %336 = vsyncadd %s326, %s335
          %s337 = smul.addr %s21, 2
          %s338 = sadd.s32 %s333, %s337
          %s339 = smul.addr %s338, 128
          %s340 = scalar_lea.hbm %s3, %s339
          %s341 = sshll.u32 %s329, 4
          %s342 = int_to_ptr.vmem [resolvable:$true] %s341
          %347 = dma.vmem_to_hbm [thread:$0]  %s342, 256, %s340, %s326, 128, 128, 8
        $region36: #{ctransformer_forward.5} parent=31 // pred_fallthru
          _
      $region32: #{ctransformer_forward.5} parent=5 // pred_fallthru
        _
      %p348 = scmp.le.s32.totalorder 2, %s12
      // Predicated region
      $region37: #{ctransformer_forward.5} parent=5 // pred_check
        %p349 = pneg %p348
      $region38: #{ctransformer_forward.5} parent=5 // pred_check_branch
        %351 = sbr.rel (%p349) target = $region40
      $region39: #{ctransformer_forward.5} parent=5 // pred_region
        %s352 = ssub.s32 %s12, 2
        // Predicated region
        $region41: #{ctransformer_forward.5} parent=39 // pred_check
          %p353 = pneg %p137
        $region42: #{ctransformer_forward.5} parent=39 // pred_check_branch
          %355 = sbr.rel (%p353) target = $region44
        $region43: #{ctransformer_forward.5} parent=39 // pred_region
          %s356 = sand.u32 %s122, 1
          %s357 = scalar_lea.sflag [#allocation3], %s356
          %s358 = sand.u32 %s122, 1
          %s359 = smul.addr %s358, 16
          %s360 = scalar_lea.vmem [#allocation2], %s359
          %361 = dma.done %s357, 256
        $region44: #{ctransformer_forward.5} parent=39 // pred_fallthru
          _
      $region40: #{ctransformer_forward.5} parent=5 // pred_fallthru
        _
    $region6: #{ctransformer_forward.5} parent=1 // loop_footer
      %s16 = sadd.s32 1, %s12
    $region7: #{ctransformer_forward.5} parent=1 // loop_footer_branch
      %11 = sbr.rel target = $region3
    $region8: #{ctransformer_forward.5} parent=1 // loop_exit
      _
    %362 = vsyncpa [#allocation3], 1
    %s363 = scalar_lea.sflag [#allocation3], 1
    %364 = vsyncpa %s363, 1

// kernel: ctransformer_forward.4
$region0: #{ctransformer_forward.4}
  #allocation0 [shape = 'u32[]', space=smem, size = 0x4, offset = 0x4, fixed_abs, tag = 'smem constant byte address 0x4 - core index']
  #allocation1 [shape = 'u32[144,128]{1,0:T(1,128)}', space=vmem, size = 0x12000, scoped, tag = 'internal scratch']
  %s0 = inlined_call_operand.vmem [shape: f32[2,16,64], index: 0, kind: input, shape index: {}]
  %s1 = inlined_call_operand.vmem [shape: bf16[2,16,8,96], index: 1, kind: input, shape index: {}]
  %s2 = inlined_call_operand.vmem [shape: f32[1,32], index: 2, kind: input, shape index: {}]
  %s3 = inlined_call_operand.vmem [shape: bf16[32,32], index: 3, kind: input, shape index: {}]
  %s4 = inlined_call_operand.vmem [shape: f32[1,32], index: 4, kind: input, shape index: {}]
  %s5 = inlined_call_operand.vmem [shape: bf16[32,32], index: 5, kind: input, shape index: {}]
  %s6 = inlined_call_operand.vmem [shape: f32[1,32], index: 6, kind: input, shape index: {}]
  %s7 = inlined_call_operand.vmem [shape: bf16[32,32], index: 7, kind: input, shape index: {}]
  %s8 = inlined_call_operand.vmem [shape: f32[1,32], index: 8, kind: input, shape index: {}]
  %s9 = inlined_call_operand.hbm [shape: f32[2,128,32], index: 9, kind: output, shape index: {0}]
  %s10 = inlined_call_operand.vmem [shape: f32[2,16,32], index: 10, kind: output, shape index: {1}]
  %11 = xla_tuple %s9, %s10
  %s12 = sld [smem:[#allocation0]]
  $region77: #{ctransformer_forward.4} parent=0
    _
  %s14 = ssub.s32 1, %s12
  %s15 = scalar_select 0, %s14, %s12
  $region1: #{ctransformer_forward.4} parent=0
    #allocation2 [shape = 'u8[131072]{0}', space=vmem, size = 0x20000, scoped, tag = 'output window, operand 0']
    #allocation3 [shape = 's32[2]{0}', space=sflag, size = 0x8, scoped, tag = 'scoped memory for ctransformer_forward.4']
    %16 = vsyncpa [#allocation3], 0
    %s17 = scalar_lea.sflag [#allocation3], 1
    %18 = vsyncpa %s17, 0
    loop: start=0, step=1, limit=4
    $region2: #{ctransformer_forward.4} parent=1 // loop_pre_header
      _
    $region3: #{ctransformer_forward.4} parent=1 // loop_header
      %s20 = sphi 0, %s24
      %p21 = scmp.ge.s32.totalorder %s20, 4
      %s27 = sphi 0, %s39
      %s28 = sphi 0, %s35
      %s29 = sphi 0, %s27
      %s30 = sphi 0, %s28
      %s31 = sphi 0, %s29
      %s32 = sphi 0, %s30
      %s44 = sphi 0, %s46
      %s47 = sphi 0, %s44
      %s48 = sphi 0, %s47
      %s64 = sphi 0, %s48
      %s72 = sphi 0, %s74
      %s75 = sphi 0, %s72
      %s76 = sphi 0, %s75
      %s92 = sphi 0, %s76
      %s96 = sphi 0, %s96
      %s98 = sphi 0, %s96
      %s99 = sphi 0, %s98
      %s113 = sphi 0, %s99
      %s117 = sphi 0, %s117
      %s119 = sphi 0, %s117
      %s120 = sphi 0, %s119
      %s134 = sphi 0, %s120
      %s138 = sphi 0, %s138
      %s140 = sphi 0, %s138
      %s141 = sphi 0, %s140
      %s155 = sphi 0, %s141
      %s159 = sphi 0, %s159
      %s161 = sphi 0, %s159
      %s162 = sphi 0, %s161
      %s176 = sphi 0, %s162
      %s180 = sphi 0, %s180
      %s182 = sphi 0, %s180
      %s183 = sphi 0, %s182
      %s197 = sphi 0, %s183
      %s201 = sphi 0, %s201
      %s203 = sphi 0, %s201
      %s204 = sphi 0, %s203
      %s218 = sphi 0, %s204
      %s222 = sphi 0, %s222
      %s224 = sphi 0, %s222
      %s225 = sphi 0, %s224
      %s239 = sphi 0, %s225
      %s247 = sphi 0, %s249
      %s250 = sphi 0, %s247
      %s251 = sphi 0, %s250
      %s267 = sphi 0, %s251
      %s275 = sphi 0, %s277
      %s278 = sphi 0, %s275
      %s279 = sphi 0, %s278
      %s295 = sphi 0, %s279
    $region4: #{ctransformer_forward.4} parent=1 // loop_header_branch
      %23 = sbr.rel (%p21) target = $region8
    $region5: #{ctransformer_forward.4} parent=1 // loop_body
      %s25 = ssub.s32 %s20, 1
      %s26 = ssub.s32 %s20, 2
      %s33 = sadd.s32 1, %s28
      %p34 = scmp.ge.s32.totalorder %s33, 1
      %s35 = scalar_select %p34, 0, %s33
      %s36 = sadd.s32 1, %s27
      %s37 = scalar_select %p34, %s36, %s27
      %p38 = scmp.ge.s32.totalorder %s37, 2
      %s39 = scalar_select %p38, 0, %s37
      %s40 = ssub.s32 %s27, %s39
      %s41 = ssub.s32 %s28, %s35
      %s42 = sor.u32 %s40, %s41
      %p43 = scmp.eq.s32.totalorder %s42, 0
      %s45 = sadd.s32 %s44, 1
      %s46 = scalar_select %p43, %s44, %s45
      %p49 = pneg %p43
      %p50 = scmp.eq.s32.totalorder %s20, 1
      %p51 = por %p49, %p50
      %p52 = scmp.ne.s32.totalorder %s44, %s47
      %p53 = scmp.eq.s32.totalorder %s20, 0
      %p54 = por %p52, %p53
      %p55 = scmp.ne.s32.totalorder %s44, %s47
      %p56 = scmp.eq.s32.totalorder %s25, 1
      %p57 = por %p55, %p56
      %p58 = scmp.ne.s32.totalorder %s47, %s48
      %p59 = scmp.eq.s32.totalorder %s25, 0
      %p60 = por %p58, %p59
      %p61 = scmp.ne.s32.totalorder %s47, %s48
      %p62 = scmp.eq.s32.totalorder %s26, 1
      %p63 = por %p61, %p62
      %p65 = scmp.ne.s32.totalorder %s48, %s64
      %p66 = scmp.eq.s32.totalorder %s26, 0
      %p67 = por %p65, %p66
      %s68 = ssub.s32 %s27, %s39
      %s69 = ssub.s32 %s28, %s35
      %s70 = sor.u32 %s68, %s69
      %p71 = scmp.eq.s32.totalorder %s70, 0
      %s73 = sadd.s32 %s72, 1
      %s74 = scalar_select %p71, %s72, %s73
      %p77 = pneg %p71
      %p78 = scmp.eq.s32.totalorder %s20, 1
      %p79 = por %p77, %p78
      %p80 = scmp.ne.s32.totalorder %s72, %s75
      %p81 = scmp.eq.s32.totalorder %s20, 0
      %p82 = por %p80, %p81
      %p83 = scmp.ne.s32.totalorder %s72, %s75
      %p84 = scmp.eq.s32.totalorder %s25, 1
      %p85 = por %p83, %p84
      %p86 = scmp.ne.s32.totalorder %s75, %s76
      %p87 = scmp.eq.s32.totalorder %s25, 0
      %p88 = por %p86, %p87
      %p89 = scmp.ne.s32.totalorder %s75, %s76
      %p90 = scmp.eq.s32.totalorder %s26, 1
      %p91 = por %p89, %p90
      %p93 = scmp.ne.s32.totalorder %s76, %s92
      %p94 = scmp.eq.s32.totalorder %s26, 0
      %p95 = por %p93, %p94
      %s97 = sadd.s32 %s96, 1
      %p100 = scmp.eq.s32.totalorder %s20, 1
      %p101 = scmp.ne.s32.totalorder %s96, %s98
      %p102 = scmp.eq.s32.totalorder %s20, 0
      %p103 = por %p101, %p102
      %p104 = scmp.ne.s32.totalorder %s96, %s98
      %p105 = scmp.eq.s32.totalorder %s25, 1
      %p106 = por %p104, %p105
      %p107 = scmp.ne.s32.totalorder %s98, %s99
      %p108 = scmp.eq.s32.totalorder %s25, 0
      %p109 = por %p107, %p108
      %p110 = scmp.ne.s32.totalorder %s98, %s99
      %p111 = scmp.eq.s32.totalorder %s26, 1
      %p112 = por %p110, %p111
      %p114 = scmp.ne.s32.totalorder %s99, %s113
      %p115 = scmp.eq.s32.totalorder %s26, 0
      %p116 = por %p114, %p115
      %s118 = sadd.s32 %s117, 1
      %p121 = scmp.eq.s32.totalorder %s20, 1
      %p122 = scmp.ne.s32.totalorder %s117, %s119
      %p123 = scmp.eq.s32.totalorder %s20, 0
      %p124 = por %p122, %p123
      %p125 = scmp.ne.s32.totalorder %s117, %s119
      %p126 = scmp.eq.s32.totalorder %s25, 1
      %p127 = por %p125, %p126
      %p128 = scmp.ne.s32.totalorder %s119, %s120
      %p129 = scmp.eq.s32.totalorder %s25, 0
      %p130 = por %p128, %p129
      %p131 = scmp.ne.s32.totalorder %s119, %s120
      %p132 = scmp.eq.s32.totalorder %s26, 1
      %p133 = por %p131, %p132
      %p135 = scmp.ne.s32.totalorder %s120, %s134
      %p136 = scmp.eq.s32.totalorder %s26, 0
      %p137 = por %p135, %p136
      %s139 = sadd.s32 %s138, 1
      %p142 = scmp.eq.s32.totalorder %s20, 1
      %p143 = scmp.ne.s32.totalorder %s138, %s140
      %p144 = scmp.eq.s32.totalorder %s20, 0
      %p145 = por %p143, %p144
      %p146 = scmp.ne.s32.totalorder %s138, %s140
      %p147 = scmp.eq.s32.totalorder %s25, 1
      %p148 = por %p146, %p147
      %p149 = scmp.ne.s32.totalorder %s140, %s141
      %p150 = scmp.eq.s32.totalorder %s25, 0
      %p151 = por %p149, %p150
      %p152 = scmp.ne.s32.totalorder %s140, %s141
      %p153 = scmp.eq.s32.totalorder %s26, 1
      %p154 = por %p152, %p153
      %p156 = scmp.ne.s32.totalorder %s141, %s155
      %p157 = scmp.eq.s32.totalorder %s26, 0
      %p158 = por %p156, %p157
      %s160 = sadd.s32 %s159, 1
      %p163 = scmp.eq.s32.totalorder %s20, 1
      %p164 = scmp.ne.s32.totalorder %s159, %s161
      %p165 = scmp.eq.s32.totalorder %s20, 0
      %p166 = por %p164, %p165
      %p167 = scmp.ne.s32.totalorder %s159, %s161
      %p168 = scmp.eq.s32.totalorder %s25, 1
      %p169 = por %p167, %p168
      %p170 = scmp.ne.s32.totalorder %s161, %s162
      %p171 = scmp.eq.s32.totalorder %s25, 0
      %p172 = por %p170, %p171
      %p173 = scmp.ne.s32.totalorder %s161, %s162
      %p174 = scmp.eq.s32.totalorder %s26, 1
      %p175 = por %p173, %p174
      %p177 = scmp.ne.s32.totalorder %s162, %s176
      %p178 = scmp.eq.s32.totalorder %s26, 0
      %p179 = por %p177, %p178
      %s181 = sadd.s32 %s180, 1
      %p184 = scmp.eq.s32.totalorder %s20, 1
      %p185 = scmp.ne.s32.totalorder %s180, %s182
      %p186 = scmp.eq.s32.totalorder %s20, 0
      %p187 = por %p185, %p186
      %p188 = scmp.ne.s32.totalorder %s180, %s182
      %p189 = scmp.eq.s32.totalorder %s25, 1
      %p190 = por %p188, %p189
      %p191 = scmp.ne.s32.totalorder %s182, %s183
      %p192 = scmp.eq.s32.totalorder %s25, 0
      %p193 = por %p191, %p192
      %p194 = scmp.ne.s32.totalorder %s182, %s183
      %p195 = scmp.eq.s32.totalorder %s26, 1
      %p196 = por %p194, %p195
      %p198 = scmp.ne.s32.totalorder %s183, %s197
      %p199 = scmp.eq.s32.totalorder %s26, 0
      %p200 = por %p198, %p199
      %s202 = sadd.s32 %s201, 1
      %p205 = scmp.eq.s32.totalorder %s20, 1
      %p206 = scmp.ne.s32.totalorder %s201, %s203
      %p207 = scmp.eq.s32.totalorder %s20, 0
      %p208 = por %p206, %p207
      %p209 = scmp.ne.s32.totalorder %s201, %s203
      %p210 = scmp.eq.s32.totalorder %s25, 1
      %p211 = por %p209, %p210
      %p212 = scmp.ne.s32.totalorder %s203, %s204
      %p213 = scmp.eq.s32.totalorder %s25, 0
      %p214 = por %p212, %p213
      %p215 = scmp.ne.s32.totalorder %s203, %s204
      %p216 = scmp.eq.s32.totalorder %s26, 1
      %p217 = por %p215, %p216
      %p219 = scmp.ne.s32.totalorder %s204, %s218
      %p220 = scmp.eq.s32.totalorder %s26, 0
      %p221 = por %p219, %p220
      %s223 = sadd.s32 %s222, 1
      %p226 = scmp.eq.s32.totalorder %s20, 1
      %p227 = scmp.ne.s32.totalorder %s222, %s224
      %p228 = scmp.eq.s32.totalorder %s20, 0
      %p229 = por %p227, %p228
      %p230 = scmp.ne.s32.totalorder %s222, %s224
      %p231 = scmp.eq.s32.totalorder %s25, 1
      %p232 = por %p230, %p231
      %p233 = scmp.ne.s32.totalorder %s224, %s225
      %p234 = scmp.eq.s32.totalorder %s25, 0
      %p235 = por %p233, %p234
      %p236 = scmp.ne.s32.totalorder %s224, %s225
      %p237 = scmp.eq.s32.totalorder %s26, 1
      %p238 = por %p236, %p237
      %p240 = scmp.ne.s32.totalorder %s225, %s239
      %p241 = scmp.eq.s32.totalorder %s26, 0
      %p242 = por %p240, %p241
      %s243 = ssub.s32 %s27, %s39
      %s244 = ssub.s32 %s28, %s35
      %s245 = sor.u32 %s243, %s244
      %p246 = scmp.eq.s32.totalorder %s245, 0
      %s248 = sadd.s32 %s247, 1
      %s249 = scalar_select %p246, %s247, %s248
      %p252 = pneg %p246
      %p253 = scmp.eq.s32.totalorder %s20, 1
      %p254 = por %p252, %p253
      %p255 = scmp.ne.s32.totalorder %s247, %s250
      %p256 = scmp.eq.s32.totalorder %s20, 0
      %p257 = por %p255, %p256
      %p258 = scmp.ne.s32.totalorder %s247, %s250
      %p259 = scmp.eq.s32.totalorder %s25, 1
      %p260 = por %p258, %p259
      %p261 = scmp.ne.s32.totalorder %s250, %s251
      %p262 = scmp.eq.s32.totalorder %s25, 0
      %p263 = por %p261, %p262
      %p264 = scmp.ne.s32.totalorder %s250, %s251
      %p265 = scmp.eq.s32.totalorder %s26, 1
      %p266 = por %p264, %p265
      %p268 = scmp.ne.s32.totalorder %s251, %s267
      %p269 = scmp.eq.s32.totalorder %s26, 0
      %p270 = por %p268, %p269
      %s271 = ssub.s32 %s27, %s39
      %s272 = ssub.s32 %s28, %s35
      %s273 = sor.u32 %s271, %s272
      %p274 = scmp.eq.s32.totalorder %s273, 0
      %s276 = sadd.s32 %s275, 1
      %s277 = scalar_select %p274, %s275, %s276
      %p280 = pneg %p274
      %p281 = scmp.eq.s32.totalorder %s20, 1
      %p282 = por %p280, %p281
      %p283 = scmp.ne.s32.totalorder %s275, %s278
      %p284 = scmp.eq.s32.totalorder %s20, 0
      %p285 = por %p283, %p284
      %p286 = scmp.ne.s32.totalorder %s275, %s278
      %p287 = scmp.eq.s32.totalorder %s25, 1
      %p288 = por %p286, %p287
      %p289 = scmp.ne.s32.totalorder %s278, %s279
      %p290 = scmp.eq.s32.totalorder %s25, 0
      %p291 = por %p289, %p290
      %p292 = scmp.ne.s32.totalorder %s278, %s279
      %p293 = scmp.eq.s32.totalorder %s26, 1
      %p294 = por %p292, %p293
      %p296 = scmp.ne.s32.totalorder %s279, %s295
      %p297 = scmp.eq.s32.totalorder %s26, 0
      %p298 = por %p296, %p297
      %p299 = scmp.le.s32.totalorder 1, %s20
      %p300 = scmp.lt.s32.totalorder %s20, 3
      %p301 = pnand %p299, %p300
      %p302 = pneg %p301
      // Predicated region
      $region9: #{ctransformer_forward.4} parent=5 // pred_check
        _
      $region10: #{ctransformer_forward.4} parent=5 // pred_check_branch
        %304 = sbr.rel (%p301) target = $region12
      $region11: #{ctransformer_forward.4} parent=5 // pred_region
        %s305 = ssub.s32 %s20, 1
        // Predicated region
        $region13: #{ctransformer_forward.4} parent=11 // pred_check
          %p306 = pneg %p109
        $region14: #{ctransformer_forward.4} parent=11 // pred_check_branch
          %308 = sbr.rel (%p306) target = $region16
        $region15: #{ctransformer_forward.4} parent=11 // pred_region
          _
        $region16: #{ctransformer_forward.4} parent=11 // pred_fallthru
          _
        // Predicated region
        $region17: #{ctransformer_forward.4} parent=11 // pred_check
          %p309 = pneg %p130
        $region18: #{ctransformer_forward.4} parent=11 // pred_check_branch
          %311 = sbr.rel (%p309) target = $region20
        $region19: #{ctransformer_forward.4} parent=11 // pred_region
          _
        $region20: #{ctransformer_forward.4} parent=11 // pred_fallthru
          _
        // Predicated region
        $region21: #{ctransformer_forward.4} parent=11 // pred_check
          %p312 = pneg %p151
        $region22: #{ctransformer_forward.4} parent=11 // pred_check_branch
          %314 = sbr.rel (%p312) target = $region24
        $region23: #{ctransformer_forward.4} parent=11 // pred_region
          _
        $region24: #{ctransformer_forward.4} parent=11 // pred_fallthru
          _
        // Predicated region
        $region25: #{ctransformer_forward.4} parent=11 // pred_check
          %p315 = pneg %p172
        $region26: #{ctransformer_forward.4} parent=11 // pred_check_branch
          %317 = sbr.rel (%p315) target = $region28
        $region27: #{ctransformer_forward.4} parent=11 // pred_region
          _
        $region28: #{ctransformer_forward.4} parent=11 // pred_fallthru
          _
        // Predicated region
        $region29: #{ctransformer_forward.4} parent=11 // pred_check
          %p318 = pneg %p193
        $region30: #{ctransformer_forward.4} parent=11 // pred_check_branch
          %320 = sbr.rel (%p318) target = $region32
        $region31: #{ctransformer_forward.4} parent=11 // pred_region
          _
        $region32: #{ctransformer_forward.4} parent=11 // pred_fallthru
          _
        // Predicated region
        $region33: #{ctransformer_forward.4} parent=11 // pred_check
          %p321 = pneg %p214
        $region34: #{ctransformer_forward.4} parent=11 // pred_check_branch
          %323 = sbr.rel (%p321) target = $region36
        $region35: #{ctransformer_forward.4} parent=11 // pred_region
          _
        $region36: #{ctransformer_forward.4} parent=11 // pred_fallthru
          _
        // Predicated region
        $region37: #{ctransformer_forward.4} parent=11 // pred_check
          %p324 = pneg %p235
        $region38: #{ctransformer_forward.4} parent=11 // pred_check_branch
          %326 = sbr.rel (%p324) target = $region40
        $region39: #{ctransformer_forward.4} parent=11 // pred_region
          _
        $region40: #{ctransformer_forward.4} parent=11 // pred_fallthru
          _
      $region12: #{ctransformer_forward.4} parent=5 // pred_fallthru
        _
      %p327 = scmp.lt.s32.totalorder %s20, 2
      // Predicated region
      $region41: #{ctransformer_forward.4} parent=5 // pred_check
        %p328 = pneg %p327
      $region42: #{ctransformer_forward.4} parent=5 // pred_check_branch
        %330 = sbr.rel (%p328) target = $region44
      $region43: #{ctransformer_forward.4} parent=5 // pred_region
        // Predicated region
        $region45: #{ctransformer_forward.4} parent=43 // pred_check
          %p331 = pneg %p54
        $region46: #{ctransformer_forward.4} parent=43 // pred_check_branch
          %333 = sbr.rel (%p331) target = $region48
        $region47: #{ctransformer_forward.4} parent=43 // pred_region
          %s334 = smul.u32 2, %s28
          %p335 = scmp.lt.s32.totalorder %s27, 1
          %s336 = scalar_select %p335, %s27, 1
          %p337 = scmp.lt.s32.totalorder %s334, 1
          %s338 = scalar_select %p337, %s334, 1
          %s339 = smul.addr %s336, 2
          %s340 = sadd.s32 %s338, %s339
          %s341 = smul.addr %s340, 8
          %s342 = scalar_lea.vmem %s0, %s341
          %s343 = smul.u32 2, %s28
        $region48: #{ctransformer_forward.4} parent=43 // pred_fallthru
          _
        // Predicated region
        $region49: #{ctransformer_forward.4} parent=43 // pred_check
          %p344 = pneg %p82
        $region50: #{ctransformer_forward.4} parent=43 // pred_check_branch
          %346 = sbr.rel (%p344) target = $region52
        $region51: #{ctransformer_forward.4} parent=43 // pred_region
          %s347 = smul.u32 16, %s28
          %p348 = scmp.lt.s32.totalorder %s27, 1
          %s349 = scalar_select %p348, %s27, 1
          %p350 = scmp.lt.s32.totalorder %s347, 15
          %s351 = scalar_select %p350, %s347, 15
          %s352 = smul.addr %s349, 16
          %s353 = sadd.s32 %s351, %s352
          %s354 = smul.addr %s353, 4
          %s355 = scalar_lea.vmem %s1, %s354
          %s356 = smul.u32 16, %s28
        $region52: #{ctransformer_forward.4} parent=43 // pred_fallthru
          _
      $region44: #{ctransformer_forward.4} parent=5 // pred_fallthru
        _
      %p357 = scmp.le.s32.totalorder 1, %s20
      %p358 = scmp.lt.s32.totalorder %s20, 3
      %p359 = pnand %p357, %p358
      %p360 = pneg %p359
      // Predicated region
      $region53: #{ctransformer_forward.4} parent=5 // pred_check
        _
      $region54: #{ctransformer_forward.4} parent=5 // pred_check_branch
        %362 = sbr.rel (%p359) target = $region56
      $region55: #{ctransformer_forward.4} parent=5 // pred_region
        %s363 = ssub.s32 %s20, 1
        %s364 = smul.u32 2, %s30
        %p365 = scmp.lt.s32.totalorder %s29, 1
        %s366 = scalar_select %p365, %s29, 1
        %p367 = scmp.lt.s32.totalorder %s364, 1
        %s368 = scalar_select %p367, %s364, 1
        %s369 = smul.addr %s366, 2
        %s370 = sadd.s32 %s368, %s369
        %s371 = smul.addr %s370, 8
        %s372 = scalar_lea.vmem %s0, %s371
        %p373 = pneg %p60
        %p374 = pneg %p57
        %s375 = smul.u32 16, %s30
        %p376 = scmp.lt.s32.totalorder %s29, 1
        %s377 = scalar_select %p376, %s29, 1
        %p378 = scmp.lt.s32.totalorder %s375, 15
        %s379 = scalar_select %p378, %s375, 15
        %s380 = smul.addr %s377, 16
        %s381 = sadd.s32 %s379, %s380
        %s382 = smul.addr %s381, 4
        %s383 = scalar_lea.vmem %s1, %s382
        %p384 = pneg %p88
        %p385 = pneg %p85
        %p386 = pneg %p109
        %p387 = pneg %p106
        %p388 = pneg %p130
        %p389 = pneg %p127
        %p390 = pneg %p151
        %p391 = pneg %p148
        %p392 = pneg %p172
        %p393 = pneg %p169
        %p394 = pneg %p193
        %p395 = pneg %p190
        %p396 = pneg %p214
        %p397 = pneg %p211
        %p398 = pneg %p235
        %p399 = pneg %p232
        %p400 = pneg %p263
        %p401 = pneg %p260
        %s402 = sand.u32 %s250, 1
        %s403 = scalar_lea.sflag [#allocation3], %s402
        %s404 = sand.u32 %s250, 1
        %s405 = smul.addr %s404, 128
        %s406 = scalar_lea.vmem [#allocation2], %s405
        %p407 = pneg %p291
        %p408 = pneg %p288
        %s409 = smul.u32 2, %s30
        %p410 = scmp.lt.s32.totalorder %s29, 1
        %s411 = scalar_select %p410, %s29, 1
        %p412 = scmp.lt.s32.totalorder %s409, 1
        %s413 = scalar_select %p412, %s409, 1
        %s414 = smul.addr %s411, 2
        %s415 = sadd.s32 %s413, %s414
        %s416 = smul.addr %s415, 8
        %s417 = scalar_lea.vmem %s10, %s416
        %s418 = smul.u32 2, %s30
        %p419 = scmp.lt.s32.totalorder %s29, 1
        %s420 = scalar_select %p419, %s29, 1
        %p421 = scmp.lt.s32.totalorder %s418, 1
        %s422 = scalar_select %p421, %s418, 1
        %s423 = smul.addr %s420, 2
        %s424 = sadd.s32 %s422, %s423
        %s425 = smul.addr %s424, 8
        %s426 = scalar_lea.vmem %s0, %s425
        %s427 = smul.u32 2, %s30
        %s428 = smul.u32 16, %s30
        %p429 = scmp.lt.s32.totalorder %s29, 1
        %s430 = scalar_select %p429, %s29, 1
        %p431 = scmp.lt.s32.totalorder %s428, 15
        %s432 = scalar_select %p431, %s428, 15
        %s433 = smul.addr %s430, 16
        %s434 = sadd.s32 %s432, %s433
        %s435 = smul.addr %s434, 4
        %s436 = scalar_lea.vmem %s1, %s435
        %s437 = smul.u32 16, %s30
        %s438 = smul.u32 16, %s30
        %s439 = smul.u32 2, %s30
        %p440 = scmp.lt.s32.totalorder %s29, 1
        %s441 = scalar_select %p440, %s29, 1
        %p442 = scmp.lt.s32.totalorder %s439, 1
        %s443 = scalar_select %p442, %s439, 1
        %s444 = smul.addr %s441, 2
        %s445 = sadd.s32 %s443, %s444
        %s446 = smul.addr %s445, 8
        %s447 = scalar_lea.vmem %s10, %s446
        %s448 = smul.u32 2, %s30
        %v450 = vld [vmem:[%s426] sm:$0xff]
        %v451 = vld [vmem:[%s426 + $0x8] sm:$0xff]
        %v452 = vld [vmem:[%s436] sm:$0xf]
        %v453 = vld [vmem:[%s436 + $0x4] sm:$0xf]
        %v454 = vld [vmem:[%s436 + $0x8] sm:$0xf]
        %v455 = vld [vmem:[%s436 + $0xc] sm:$0xf]
        %v456 = vld [vmem:[%s436 + $0x10] sm:$0xf]
        %v457 = vld [vmem:[%s436 + $0x14] sm:$0xf]
        %v458 = vld [vmem:[%s436 + $0x18] sm:$0xf]
        %v459 = vld [vmem:[%s436 + $0x1c] sm:$0xf]
        %v460 = vld [vmem:[%s436 + $0x20] sm:$0xf]
        %v461 = vld [vmem:[%s436 + $0x24] sm:$0xf]
        %v462 = vld [vmem:[%s436 + $0x28] sm:$0xf]
        %v463 = vld [vmem:[%s436 + $0x2c] sm:$0xf]
        %v464 = vld [vmem:[%s436 + $0x30] sm:$0xf]
        %v465 = vld [vmem:[%s436 + $0x34] sm:$0xf]
        %v466 = vld [vmem:[%s436 + $0x38] sm:$0xf]
        %v467 = vld [vmem:[%s436 + $0x3c] sm:$0xf]
        %v468 = vunpack.c.l.bf16 %v452
        %v469 = vunpack.c.l.bf16 %v453
        %v470 = vunpack.c.l.bf16 %v454
        %v471 = vunpack.c.l.bf16 %v455
        %v472 = vunpack.c.l.bf16 %v456
        %v473 = vunpack.c.l.bf16 %v457
        %v474 = vunpack.c.l.bf16 %v458
        %v475 = vunpack.c.l.bf16 %v459
        %v476 = vunpack.c.l.bf16 %v460
        %v477 = vunpack.c.l.bf16 %v461
        %v478 = vunpack.c.l.bf16 %v462
        %v479 = vunpack.c.l.bf16 %v463
        %v480 = vunpack.c.l.bf16 %v464
        %v481 = vunpack.c.l.bf16 %v465
        %v482 = vunpack.c.l.bf16 %v466
        %v483 = vunpack.c.l.bf16 %v467
        %v486 = vcombine.high %v450, %v450
        %v488 = vunpack.c.l.s4 1966171168
        %v489 = vunpack.c.0.s8 %v488
        %v490 = vlaneseq
        %v491 = vshrl.u32 %v490, 7
        %v492 = vsub.s32 %v489, %v491
        %v493 = vrot.slane %v450, %v492
        %v495 = vunpack.c.l.s4 1966171168
        %v496 = vunpack.c.0.s8 %v495
        %v497 = vlaneseq
        %v498 = vshrl.u32 %v497, 7
        %v499 = vsub.s32 %v496, %v498
        %v500 = vrot.slane %v486, %v499
        %v501 = vcombine.high %v493, %v493
        %v502 = vcombine.high %v500, %v500
        %v504 = vunpack.c.l.s4 1966171168
        %v505 = vunpack.c.0.s8 %v504
        %v506 = vlaneseq
        %v507 = vshrl.u32 %v506, 7
        %v508 = vsub.s32 %v505, %v507
        %v509 = vrot.slane %v493, %v508
        %v511 = vunpack.c.l.s4 1966171168
        %v512 = vunpack.c.0.s8 %v511
        %v513 = vlaneseq
        %v514 = vshrl.u32 %v513, 7
        %v515 = vsub.s32 %v512, %v514
        %v516 = vrot.slane %v500, %v515
        %v518 = vunpack.c.l.s4 1966171168
        %v519 = vunpack.c.0.s8 %v518
        %v520 = vlaneseq
        %v521 = vshrl.u32 %v520, 7
        %v522 = vsub.s32 %v519, %v521
        %v523 = vrot.slane %v501, %v522
        %v525 = vunpack.c.l.s4 1966171168
        %v526 = vunpack.c.0.s8 %v525
        %v527 = vlaneseq
        %v528 = vshrl.u32 %v527, 7
        %v529 = vsub.s32 %v526, %v528
        %v530 = vrot.slane %v502, %v529
        %v531 = vcombine.high %v509, %v509
        %v532 = vcombine.high %v516, %v516
        %v533 = vcombine.high %v523, %v523
        %v534 = vcombine.high %v530, %v530
        %v535 = vcombine.high %v451, %v451
        %v537 = vunpack.c.l.s4 1966171168
        %v538 = vunpack.c.0.s8 %v537
        %v539 = vlaneseq
        %v540 = vshrl.u32 %v539, 7
        %v541 = vsub.s32 %v538, %v540
        %v542 = vrot.slane %v451, %v541
        %v544 = vunpack.c.l.s4 1966171168
        %v545 = vunpack.c.0.s8 %v544
        %v546 = vlaneseq
        %v547 = vshrl.u32 %v546, 7
        %v548 = vsub.s32 %v545, %v547
        %v549 = vrot.slane %v535, %v548
        %v550 = vcombine.high %v542, %v542
        %v551 = vcombine.high %v549, %v549
        %v553 = vunpack.c.l.s4 1966171168
        %v554 = vunpack.c.0.s8 %v553
        %v555 = vlaneseq
        %v556 = vshrl.u32 %v555, 7
        %v557 = vsub.s32 %v554, %v556
        %v558 = vrot.slane %v542, %v557
        %v560 = vunpack.c.l.s4 1966171168
        %v561 = vunpack.c.0.s8 %v560
        %v562 = vlaneseq
        %v563 = vshrl.u32 %v562, 7
        %v564 = vsub.s32 %v561, %v563
        %v565 = vrot.slane %v549, %v564
        %v567 = vunpack.c.l.s4 1966171168
        %v568 = vunpack.c.0.s8 %v567
        %v569 = vlaneseq
        %v570 = vshrl.u32 %v569, 7
        %v571 = vsub.s32 %v568, %v570
        %v572 = vrot.slane %v550, %v571
        %v574 = vunpack.c.l.s4 1966171168
        %v575 = vunpack.c.0.s8 %v574
        %v576 = vlaneseq
        %v577 = vshrl.u32 %v576, 7
        %v578 = vsub.s32 %v575, %v577
        %v579 = vrot.slane %v551, %v578
        %v580 = vcombine.high %v558, %v558
        %v581 = vcombine.high %v565, %v565
        %v582 = vcombine.high %v572, %v572
        %v583 = vcombine.high %v579, %v579
        %v584 = vlaneseq
        %v585 = vshrl.u32 %v584, 7
        %v586 = vsub.s32 0, %v585
        %v587 = vrot.slane %v509, %v586
        %v588 = vlaneseq
        %v589 = vshrl.u32 %v588, 7
        %v590 = vsub.s32 0, %v589
        %v591 = vrot.slane %v523, %v590
        %v592 = vlaneseq
        %v593 = vshrl.u32 %v592, 7
        %v594 = vsub.s32 0, %v593
        %v595 = vrot.slane %v531, %v594
        %v596 = vlaneseq
        %v597 = vshrl.u32 %v596, 7
        %v598 = vsub.s32 0, %v597
        %v599 = vrot.slane %v533, %v598
        %v600 = vlaneseq
        %v601 = vshrl.u32 %v600, 7
        %v602 = vsub.s32 0, %v601
        %v603 = vrot.slane %v516, %v602
        %v604 = vlaneseq
        %v605 = vshrl.u32 %v604, 7
        %v606 = vsub.s32 0, %v605
        %v607 = vrot.slane %v530, %v606
        %v608 = vlaneseq
        %v609 = vshrl.u32 %v608, 7
        %v610 = vsub.s32 0, %v609
        %v611 = vrot.slane %v532, %v610
        %v612 = vlaneseq
        %v613 = vshrl.u32 %v612, 7
        %v614 = vsub.s32 0, %v613
        %v615 = vrot.slane %v534, %v614
        %v616 = vlaneseq
        %v617 = vshrl.u32 %v616, 7
        %v618 = vsub.s32 0, %v617
        %v619 = vrot.slane %v558, %v618
        %v620 = vlaneseq
        %v621 = vshrl.u32 %v620, 7
        %v622 = vsub.s32 0, %v621
        %v623 = vrot.slane %v572, %v622
        %v624 = vlaneseq
        %v625 = vshrl.u32 %v624, 7
        %v626 = vsub.s32 0, %v625
        %v627 = vrot.slane %v580, %v626
        %v628 = vlaneseq
        %v629 = vshrl.u32 %v628, 7
        %v630 = vsub.s32 0, %v629
        %v631 = vrot.slane %v582, %v630
        %v632 = vlaneseq
        %v633 = vshrl.u32 %v632, 7
        %v634 = vsub.s32 0, %v633
        %v635 = vrot.slane %v565, %v634
        %v636 = vlaneseq
        %v637 = vshrl.u32 %v636, 7
        %v638 = vsub.s32 0, %v637
        %v639 = vrot.slane %v579, %v638
        %v640 = vlaneseq
        %v641 = vshrl.u32 %v640, 7
        %v642 = vsub.s32 0, %v641
        %v643 = vrot.slane %v581, %v642
        %v644 = vlaneseq
        %v645 = vshrl.u32 %v644, 7
        %v646 = vsub.s32 0, %v645
        %v647 = vrot.slane %v583, %v646
        %680 = vrot.lane.b32.xlu0 %v468, 96
        %v681 = vpop.permute.xlu0 %680
        %682 = vrot.lane.b32.xlu0 %v469, 96
        %v683 = vpop.permute.xlu0 %682
        %684 = vrot.lane.b32.xlu0 %v470, 96
        %v685 = vpop.permute.xlu0 %684
        %686 = vrot.lane.b32.xlu0 %v471, 96
        %v687 = vpop.permute.xlu0 %686
        %688 = vrot.lane.b32.xlu0 %v472, 96
        %v689 = vpop.permute.xlu0 %688
        %690 = vrot.lane.b32.xlu0 %v473, 96
        %v691 = vpop.permute.xlu0 %690
        %692 = vrot.lane.b32.xlu0 %v474, 96
        %v693 = vpop.permute.xlu0 %692
        %694 = vrot.lane.b32.xlu0 %v475, 96
        %v695 = vpop.permute.xlu0 %694
        %696 = vrot.lane.b32.xlu0 %v476, 96
        %v697 = vpop.permute.xlu0 %696
        %698 = vrot.lane.b32.xlu0 %v477, 96
        %v699 = vpop.permute.xlu0 %698
        %700 = vrot.lane.b32.xlu0 %v478, 96
        %v701 = vpop.permute.xlu0 %700
        %702 = vrot.lane.b32.xlu0 %v479, 96
        %v703 = vpop.permute.xlu0 %702
        %704 = vrot.lane.b32.xlu0 %v480, 96
        %v705 = vpop.permute.xlu0 %704
        %706 = vrot.lane.b32.xlu0 %v481, 96
        %v707 = vpop.permute.xlu0 %706
        %708 = vrot.lane.b32.xlu0 %v482, 96
        %v709 = vpop.permute.xlu0 %708
        %710 = vrot.lane.b32.xlu0 %v483, 96
        %v711 = vpop.permute.xlu0 %710
        %v728 = vsub.f32 %v587, %v681
        %v729 = vsub.f32 %v591, %v683
        %v730 = vsub.f32 %v595, %v685
        %v731 = vsub.f32 %v599, %v687
        %v732 = vsub.f32 %v603, %v689
        %v733 = vsub.f32 %v607, %v691
        %v734 = vsub.f32 %v611, %v693
        %v735 = vsub.f32 %v615, %v695
        %v736 = vsub.f32 %v619, %v697
        %v737 = vsub.f32 %v623, %v699
        %v738 = vsub.f32 %v627, %v701
        %v739 = vsub.f32 %v631, %v703
        %v740 = vsub.f32 %v635, %v705
        %v741 = vsub.f32 %v639, %v707
        %v742 = vsub.f32 %v643, %v709
        %v743 = vsub.f32 %v647, %v711
        %v744 = vld [vmem:[%s2] sm:$0x1]
        %v746 = vlaneseq
        %v747 = vshrl.u32 %v746, 7
        %v748 = vsub.s32 0, %v747
        %v749 = vrot.slane %v744, %v748
        %750 = vrot.lane.b32.xlu0 %v749, 32
        %v751 = vpop.permute.xlu0 %750
        %v753 = vadd.f32 %v728, %v751
        %v754 = vadd.f32 %v729, %v751
        %v755 = vadd.f32 %v730, %v751
        %v756 = vadd.f32 %v731, %v751
        %v757 = vadd.f32 %v732, %v751
        %v758 = vadd.f32 %v733, %v751
        %v759 = vadd.f32 %v734, %v751
        %v760 = vadd.f32 %v735, %v751
        %v761 = vadd.f32 %v736, %v751
        %v762 = vadd.f32 %v737, %v751
        %v763 = vadd.f32 %v738, %v751
        %v764 = vadd.f32 %v739, %v751
        %v765 = vadd.f32 %v740, %v751
        %v766 = vadd.f32 %v741, %v751
        %v767 = vadd.f32 %v742, %v751
        %v768 = vadd.f32 %v743, %v751
        %v769 = vmax.f32 %v753, 0.0
        %v770 = vmax.f32 %v754, 0.0
        %v771 = vmax.f32 %v755, 0.0
        %v772 = vmax.f32 %v756, 0.0
        %v773 = vmax.f32 %v757, 0.0
        %v774 = vmax.f32 %v758, 0.0
        %v775 = vmax.f32 %v759, 0.0
        %v776 = vmax.f32 %v760, 0.0
        %v777 = vmax.f32 %v761, 0.0
        %v778 = vmax.f32 %v762, 0.0
        %v779 = vmax.f32 %v763, 0.0
        %v780 = vmax.f32 %v764, 0.0
        %v781 = vmax.f32 %v765, 0.0
        %v782 = vmax.f32 %v766, 0.0
        %v783 = vmax.f32 %v767, 0.0
        %v784 = vmax.f32 %v768, 0.0
        %v785 = vpack.c.bf16 %v770, %v769
        %v786 = vpack.c.bf16 %v772, %v771
        %v787 = vpack.c.bf16 %v774, %v773
        %v788 = vpack.c.bf16 %v776, %v775
        %v789 = vpack.c.bf16 %v778, %v777
        %v790 = vpack.c.bf16 %v780, %v779
        %v791 = vpack.c.bf16 %v782, %v781
        %v792 = vpack.c.bf16 %v784, %v783
        %v793 = vld [vmem:[%s3] sm:$0xf]
        %v794 = vld [vmem:[%s3 + $0x4] sm:$0xf]
        %v795 = vld [vmem:[%s3 + $0x8] sm:$0xf]
        %v796 = vld [vmem:[%s3 + $0xc] sm:$0xf]
        %v797 = vld [vmem:[%s4] sm:$0x1]
        %v799 = vlaneseq
        %v800 = vshrl.u32 %v799, 7
        %v801 = vsub.s32 0, %v800
        %v802 = vrot.slane %v797, %v801
        %812 = vrot.lane.b32.xlu0 %v785, 96
        %v813 = vpop.permute.xlu0 %812
        %814 = vrot.lane.b32.xlu0 %v786, 96
        %v815 = vpop.permute.xlu0 %814
        %816 = vrot.lane.b32.xlu0 %v787, 96
        %v817 = vpop.permute.xlu0 %816
        %818 = vrot.lane.b32.xlu0 %v788, 96
        %v819 = vpop.permute.xlu0 %818
        %820 = vrot.lane.b32.xlu0 %v789, 96
        %v821 = vpop.permute.xlu0 %820
        %822 = vrot.lane.b32.xlu0 %v790, 96
        %v823 = vpop.permute.xlu0 %822
        %824 = vrot.lane.b32.xlu0 %v791, 96
        %v825 = vpop.permute.xlu0 %824
        %826 = vrot.lane.b32.xlu0 %v792, 96
        %v827 = vpop.permute.xlu0 %826
        %v832 = vunpack.c.l.b16 %v793
        %v833 = vunpack.c.l.b16 %v794
        %v834 = vunpack.c.l.b16 %v795
        %v835 = vunpack.c.l.b16 %v796
        %v836 = vpack.c.b16 %v833, %v832
        %v837 = vpack.c.b16 %v835, %v834
        %vm840 = vcmask 261120
        %v842 = vsel %vm840, %v813, 0
        %v845 = vsel %vm840, %v815, 0
        %v848 = vsel %vm840, %v817, 0
        %v851 = vsel %vm840, %v819, 0
        %v854 = vsel %vm840, %v821, 0
        %v857 = vsel %vm840, %v823, 0
        %v860 = vsel %vm840, %v825, 0
        %v863 = vsel %vm840, %v827, 0
        %865 = vmatprep.subr.bf16.mxu0 0
        %866 = vmatpush1.bf16.msra.mxu0 %v836
        %867 = vmatprep.subr.bf16.mxu0 0
        %868 = vmatpush1.bf16.msra.mxu0 %v837
        %869 = vmatprep.subr.bf16.mxu0 0
        %870 = vmatpush1.bf16.msra.mxu0 0
        %871 = vmatprep.subr.bf16.mxu0 0
        %872 = vmatpush1.bf16.msra.mxu0 0
        %873 = vmatprep.subr.bf16.mxu0 0
        %874 = vmatpush1.bf16.msra.mxu0 0
        %875 = vmatprep.subr.bf16.mxu0 0
        %876 = vmatpush1.bf16.msra.mxu0 0
        %877 = vmatprep.subr.bf16.mxu0 0
        %878 = vmatpush1.bf16.msra.mxu0 0
        %879 = vmatprep.subr.bf16.mxu0 0
        %880 = vmatpush1.bf16.msra.mxu0 0
        %881 = vmatprep.subr.bf16.mxu0 0
        %882 = vmatpush1.bf16.msra.mxu0 0
        %883 = vmatprep.subr.bf16.mxu0 0
        %884 = vmatpush1.bf16.msra.mxu0 0
        %885 = vmatprep.subr.bf16.mxu0 0
        %886 = vmatpush1.bf16.msra.mxu0 0
        %887 = vmatprep.subr.bf16.mxu0 0
        %888 = vmatpush1.bf16.msra.mxu0 0
        %889 = vmatprep.subr.bf16.mxu0 0
        %890 = vmatpush1.bf16.msra.mxu0 0
        %891 = vmatprep.subr.bf16.mxu0 0
        %892 = vmatpush1.bf16.msra.mxu0 0
        %893 = vmatprep.subr.bf16.mxu0 0
        %894 = vmatpush1.bf16.msra.mxu0 0
        %895 = vmatprep.subr.bf16.mxu0 0
        %896 = vmatpush1.bf16.msra.mxu0 0
        %897 = vmatprep.mubr.bf16.mxu0 0
        %898 = vmatmul.mubr.bf16.gmra.mrb[0].mxu0 %v842
        %v899 = vpop.f32.mrb[0].mxu0
        %v900 = vadd.f32 %v802, %v899
        %v901 = vpop.f32.mrb[0].mxu0
        %v902 = vpop.f32.mrb[0].mxu0
        %v903 = vadd.f32 %v802, %v902
        %v904 = vpop.f32.mrb[0].mxu0
        %905 = vmatprep.mubr.bf16.mxu0 0
        %906 = vmatmul.mubr.bf16.gmra.mrb[0].mxu0 %v845
        %v907 = vpop.f32.mrb[0].mxu0
        %v908 = vadd.f32 %v802, %v907
        %v909 = vpop.f32.mrb[0].mxu0
        %v910 = vpop.f32.mrb[0].mxu0
        %v911 = vadd.f32 %v802, %v910
        %v912 = vpop.f32.mrb[0].mxu0
        %913 = vmatprep.mubr.bf16.mxu0 0
        %914 = vmatmul.mubr.bf16.gmra.mrb[0].mxu0 %v848
        %v915 = vpop.f32.mrb[0].mxu0
        %v916 = vadd.f32 %v802, %v915
        %v917 = vpop.f32.mrb[0].mxu0
        %v918 = vpop.f32.mrb[0].mxu0
        %v919 = vadd.f32 %v802, %v918
        %v920 = vpop.f32.mrb[0].mxu0
        %921 = vmatprep.mubr.bf16.mxu0 0
        %922 = vmatmul.mubr.bf16.gmra.mrb[0].mxu0 %v851
        %v923 = vpop.f32.mrb[0].mxu0
        %v924 = vadd.f32 %v802, %v923
        %v925 = vpop.f32.mrb[0].mxu0
        %v926 = vpop.f32.mrb[0].mxu0
        %v927 = vadd.f32 %v802, %v926
        %v928 = vpop.f32.mrb[0].mxu0
        %929 = vmatprep.mubr.bf16.mxu0 0
        %930 = vmatmul.mubr.bf16.gmra.mrb[0].mxu0 %v854
        %v931 = vpop.f32.mrb[0].mxu0
        %v932 = vadd.f32 %v802, %v931
        %v933 = vpop.f32.mrb[0].mxu0
        %v934 = vpop.f32.mrb[0].mxu0
        %v935 = vadd.f32 %v802, %v934
        %v936 = vpop.f32.mrb[0].mxu0
        %937 = vmatprep.mubr.bf16.mxu0 0
        %938 = vmatmul.mubr.bf16.gmra.mrb[0].mxu0 %v857
        %v939 = vpop.f32.mrb[0].mxu0
        %v940 = vadd.f32 %v802, %v939
        %v941 = vpop.f32.mrb[0].mxu0
        %v942 = vpop.f32.mrb[0].mxu0
        %v943 = vadd.f32 %v802, %v942
        %v944 = vpop.f32.mrb[0].mxu0
        %945 = vmatprep.mubr.bf16.mxu0 0
        %946 = vmatmul.mubr.bf16.gmra.mrb[0].mxu0 %v860
        %v947 = vpop.f32.mrb[0].mxu0
        %v948 = vadd.f32 %v802, %v947
        %v949 = vpop.f32.mrb[0].mxu0
        %v950 = vpop.f32.mrb[0].mxu0
        %v951 = vadd.f32 %v802, %v950
        %v952 = vpop.f32.mrb[0].mxu0
        %953 = vmatprep.mubr.bf16.mxu0 0
        %954 = vmatmul.mubr.bf16.gmra.mrb[0].mxu0 %v863
        %v955 = vpop.f32.mrb[0].mxu0
        %v956 = vadd.f32 %v802, %v955
        %v957 = vpop.f32.mrb[0].mxu0
        %v958 = vpop.f32.mrb[0].mxu0
        %v959 = vadd.f32 %v802, %v958
        %v960 = vpop.f32.mrb[0].mxu0
        %961 = vdwg.mxu0
        %v962 = vsub.f32 %v587, %v468
        %v963 = vsub.f32 %v591, %v469
        %v964 = vsub.f32 %v595, %v470
        %v965 = vsub.f32 %v599, %v471
        %v966 = vsub.f32 %v603, %v472
        %v967 = vsub.f32 %v607, %v473
        %v968 = vsub.f32 %v611, %v474
        %v969 = vsub.f32 %v615, %v475
        %v970 = vsub.f32 %v619, %v476
        %v971 = vsub.f32 %v623, %v477
        %v972 = vsub.f32 %v627, %v478
        %v973 = vsub.f32 %v631, %v479
        %v974 = vsub.f32 %v635, %v480
        %v975 = vsub.f32 %v639, %v481
        %v976 = vsub.f32 %v643, %v482
        %v977 = vsub.f32 %v647, %v483
        %v978 = vadd.f32 %v962, %v900
        %v979 = vadd.f32 %v963, %v903
        %v980 = vadd.f32 %v964, %v908
        %v981 = vadd.f32 %v965, %v911
        %v982 = vadd.f32 %v966, %v916
        %v983 = vadd.f32 %v967, %v919
        %v984 = vadd.f32 %v968, %v924
        %v985 = vadd.f32 %v969, %v927
        %v986 = vadd.f32 %v970, %v932
        %v987 = vadd.f32 %v971, %v935
        %v988 = vadd.f32 %v972, %v940
        %v989 = vadd.f32 %v973, %v943
        %v990 = vadd.f32 %v974, %v948
        %v991 = vadd.f32 %v975, %v951
        %v992 = vadd.f32 %v976, %v956
        %v993 = vadd.f32 %v977, %v959
        %v994 = vpack.c.bf16 %v979, %v978
        %v995 = vpack.c.bf16 %v981, %v980
        %v996 = vpack.c.bf16 %v983, %v982
        %v997 = vpack.c.bf16 %v985, %v984
        %v998 = vpack.c.bf16 %v987, %v986
        %v999 = vpack.c.bf16 %v989, %v988
        %v1000 = vpack.c.bf16 %v991, %v990
        %v1001 = vpack.c.bf16 %v993, %v992
        %v1002 = vld [vmem:[%s5] sm:$0xf]
        %v1003 = vld [vmem:[%s5 + $0x4] sm:$0xf]
        %v1004 = vld [vmem:[%s5 + $0x8] sm:$0xf]
        %v1005 = vld [vmem:[%s5 + $0xc] sm:$0xf]
        %v1006 = vld [vmem:[%s6] sm:$0x1]
        %v1008 = vlaneseq
        %v1009 = vshrl.u32 %v1008, 7
        %v1010 = vsub.s32 0, %v1009
        %v1011 = vrot.slane %v1006, %v1010
        %v1017 = vunpack.c.l.b16 %v1002
        %v1018 = vunpack.c.l.b16 %v1003
        %v1019 = vunpack.c.l.b16 %v1004
        %v1020 = vunpack.c.l.b16 %v1005
        %v1021 = vpack.c.b16 %v1018, %v1017
        %v1022 = vpack.c.b16 %v1020, %v1019
        %v1026 = vsel %vm840, %v994, 0
        %v1029 = vsel %vm840, %v995, 0
        %v1032 = vsel %vm840, %v996, 0
        %v1035 = vsel %vm840, %v997, 0
        %v1038 = vsel %vm840, %v998, 0
        %v1041 = vsel %vm840, %v999, 0
        %v1044 = vsel %vm840, %v1000, 0
        %v1047 = vsel %vm840, %v1001, 0
        %1049 = vmatprep.subr.bf16.mxu0 0
        %1050 = vmatpush1.bf16.msra.mxu0 %v1021
        %1051 = vmatprep.subr.bf16.mxu0 0
        %1052 = vmatpush1.bf16.msra.mxu0 %v1022
        %1053 = vmatprep.subr.bf16.mxu0 0
        %1054 = vmatpush1.bf16.msra.mxu0 0
        %1055 = vmatprep.subr.bf16.mxu0 0
        %1056 = vmatpush1.bf16.msra.mxu0 0
        %1057 = vmatprep.subr.bf16.mxu0 0
        %1058 = vmatpush1.bf16.msra.mxu0 0
        %1059 = vmatprep.subr.bf16.mxu0 0
        %1060 = vmatpush1.bf16.msra.mxu0 0
        %1061 = vmatprep.subr.bf16.mxu0 0
        %1062 = vmatpush1.bf16.msra.mxu0 0
        %1063 = vmatprep.subr.bf16.mxu0 0
        %1064 = vmatpush1.bf16.msra.mxu0 0
        %1065 = vmatprep.subr.bf16.mxu0 0
        %1066 = vmatpush1.bf16.msra.mxu0 0
        %1067 = vmatprep.subr.bf16.mxu0 0
        %1068 = vmatpush1.bf16.msra.mxu0 0
        %1069 = vmatprep.subr.bf16.mxu0 0
        %1070 = vmatpush1.bf16.msra.mxu0 0
        %1071 = vmatprep.subr.bf16.mxu0 0
        %1072 = vmatpush1.bf16.msra.mxu0 0
        %1073 = vmatprep.subr.bf16.mxu0 0
        %1074 = vmatpush1.bf16.msra.mxu0 0
        %1075 = vmatprep.subr.bf16.mxu0 0
        %1076 = vmatpush1.bf16.msra.mxu0 0
        %1077 = vmatprep.subr.bf16.mxu0 0
        %1078 = vmatpush1.bf16.msra.mxu0 0
        %1079 = vmatprep.subr.bf16.mxu0 0
        %1080 = vmatpush1.bf16.msra.mxu0 0
        %1081 = vmatprep.mubr.bf16.mxu0 0
        %1082 = vmatmul.mubr.bf16.gmra.mrb[0].mxu0 %v1026
        %v1083 = vpop.f32.mrb[0].mxu0
        %v1084 = vadd.f32 %v1011, %v1083
        %v1085 = vpop.f32.mrb[0].mxu0
        %v1086 = vpop.f32.mrb[0].mxu0
        %v1087 = vadd.f32 %v1011, %v1086
        %v1088 = vpop.f32.mrb[0].mxu0
        %1089 = vmatprep.mubr.bf16.mxu0 0
        %1090 = vmatmul.mubr.bf16.gmra.mrb[0].mxu0 %v1029
        %v1091 = vpop.f32.mrb[0].mxu0
        %v1092 = vadd.f32 %v1011, %v1091
        %v1093 = vpop.f32.mrb[0].mxu0
        %v1094 = vpop.f32.mrb[0].mxu0
        %v1095 = vadd.f32 %v1011, %v1094
        %v1096 = vpop.f32.mrb[0].mxu0
        %1097 = vmatprep.mubr.bf16.mxu0 0
        %1098 = vmatmul.mubr.bf16.gmra.mrb[0].mxu0 %v1032
        %v1099 = vpop.f32.mrb[0].mxu0
        %v1100 = vadd.f32 %v1011, %v1099
        %v1101 = vpop.f32.mrb[0].mxu0
        %v1102 = vpop.f32.mrb[0].mxu0
        %v1103 = vadd.f32 %v1011, %v1102
        %v1104 = vpop.f32.mrb[0].mxu0
        %1105 = vmatprep.mubr.bf16.mxu0 0
        %1106 = vmatmul.mubr.bf16.gmra.mrb[0].mxu0 %v1035
        %v1107 = vpop.f32.mrb[0].mxu0
        %v1108 = vadd.f32 %v1011, %v1107
        %v1109 = vpop.f32.mrb[0].mxu0
        %v1110 = vpop.f32.mrb[0].mxu0
        %v1111 = vadd.f32 %v1011, %v1110
        %v1112 = vpop.f32.mrb[0].mxu0
        %1113 = vmatprep.mubr.bf16.mxu0 0
        %1114 = vmatmul.mubr.bf16.gmra.mrb[0].mxu0 %v1038
        %v1115 = vpop.f32.mrb[0].mxu0
        %v1116 = vadd.f32 %v1011, %v1115
        %v1117 = vpop.f32.mrb[0].mxu0
        %v1118 = vpop.f32.mrb[0].mxu0
        %v1119 = vadd.f32 %v1011, %v1118
        %v1120 = vpop.f32.mrb[0].mxu0
        %1121 = vmatprep.mubr.bf16.mxu0 0
        %1122 = vmatmul.mubr.bf16.gmra.mrb[0].mxu0 %v1041
        %v1123 = vpop.f32.mrb[0].mxu0
        %v1124 = vadd.f32 %v1011, %v1123
        %v1125 = vpop.f32.mrb[0].mxu0
        %v1126 = vpop.f32.mrb[0].mxu0
        %v1127 = vadd.f32 %v1011, %v1126
        %v1128 = vpop.f32.mrb[0].mxu0
        %1129 = vmatprep.mubr.bf16.mxu0 0
        %1130 = vmatmul.mubr.bf16.gmra.mrb[0].mxu0 %v1044
        %v1131 = vpop.f32.mrb[0].mxu0
        %v1132 = vadd.f32 %v1011, %v1131
        %v1133 = vpop.f32.mrb[0].mxu0
        %v1134 = vpop.f32.mrb[0].mxu0
        %v1135 = vadd.f32 %v1011, %v1134
        %v1136 = vpop.f32.mrb[0].mxu0
        %1137 = vmatprep.mubr.bf16.mxu0 0
        %1138 = vmatmul.mubr.bf16.gmra.mrb[0].mxu0 %v1047
        %v1139 = vpop.f32.mrb[0].mxu0
        %v1140 = vadd.f32 %v1011, %v1139
        %v1141 = vpop.f32.mrb[0].mxu0
        %v1142 = vpop.f32.mrb[0].mxu0
        %v1143 = vadd.f32 %v1011, %v1142
        %v1144 = vpop.f32.mrb[0].mxu0
        %1145 = vdwg.mxu0
        %v1146 = vmax.f32 %v1084, 0.0
        %v1147 = vmax.f32 %v1087, 0.0
        %v1148 = vmax.f32 %v1092, 0.0
        %v1149 = vmax.f32 %v1095, 0.0
        %v1150 = vmax.f32 %v1100, 0.0
        %v1151 = vmax.f32 %v1103, 0.0
        %v1152 = vmax.f32 %v1108, 0.0
        %v1153 = vmax.f32 %v1111, 0.0
        %v1154 = vmax.f32 %v1116, 0.0
        %v1155 = vmax.f32 %v1119, 0.0
        %v1156 = vmax.f32 %v1124, 0.0
        %v1157 = vmax.f32 %v1127, 0.0
        %v1158 = vmax.f32 %v1132, 0.0
        %v1159 = vmax.f32 %v1135, 0.0
        %v1160 = vmax.f32 %v1140, 0.0
        %v1161 = vmax.f32 %v1143, 0.0
        %v1162 = vpack.c.bf16 %v1147, %v1146
        %v1163 = vpack.c.bf16 %v1149, %v1148
        %v1164 = vpack.c.bf16 %v1151, %v1150
        %v1165 = vpack.c.bf16 %v1153, %v1152
        %v1166 = vpack.c.bf16 %v1155, %v1154
        %v1167 = vpack.c.bf16 %v1157, %v1156
        %v1168 = vpack.c.bf16 %v1159, %v1158
        %v1169 = vpack.c.bf16 %v1161, %v1160
        %v1170 = vld [vmem:[%s7] sm:$0xf]
        %v1171 = vld [vmem:[%s7 + $0x4] sm:$0xf]
        %v1172 = vld [vmem:[%s7 + $0x8] sm:$0xf]
        %v1173 = vld [vmem:[%s7 + $0xc] sm:$0xf]
        %v1174 = vld [vmem:[%s8] sm:$0x1]
        %v1176 = vlaneseq
        %v1177 = vshrl.u32 %v1176, 7
        %v1178 = vsub.s32 0, %v1177
        %v1179 = vrot.slane %v1174, %v1178
        %v1185 = vunpack.c.l.b16 %v1170
        %v1186 = vunpack.c.l.b16 %v1171
        %v1187 = vunpack.c.l.b16 %v1172
        %v1188 = vunpack.c.l.b16 %v1173
        %v1189 = vpack.c.b16 %v1186, %v1185
        %v1190 = vpack.c.b16 %v1188, %v1187
        %v1194 = vsel %vm840, %v1162, 0
        %v1197 = vsel %vm840, %v1163, 0
        %v1200 = vsel %vm840, %v1164, 0
        %v1203 = vsel %vm840, %v1165, 0
        %v1206 = vsel %vm840, %v1166, 0
        %v1209 = vsel %vm840, %v1167, 0
        %v1212 = vsel %vm840, %v1168, 0
        %v1215 = vsel %vm840, %v1169, 0
        %1217 = vmatprep.subr.bf16.mxu0 0
        %1218 = vmatpush1.bf16.msra.mxu0 %v1189
        %1219 = vmatprep.subr.bf16.mxu0 0
        %1220 = vmatpush1.bf16.msra.mxu0 %v1190
        %1221 = vmatprep.subr.bf16.mxu0 0
        %1222 = vmatpush1.bf16.msra.mxu0 0
        %1223 = vmatprep.subr.bf16.mxu0 0
        %1224 = vmatpush1.bf16.msra.mxu0 0
        %1225 = vmatprep.subr.bf16.mxu0 0
        %1226 = vmatpush1.bf16.msra.mxu0 0
        %1227 = vmatprep.subr.bf16.mxu0 0
        %1228 = vmatpush1.bf16.msra.mxu0 0
        %1229 = vmatprep.subr.bf16.mxu0 0
        %1230 = vmatpush1.bf16.msra.mxu0 0
        %1231 = vmatprep.subr.bf16.mxu0 0
        %1232 = vmatpush1.bf16.msra.mxu0 0
        %1233 = vmatprep.subr.bf16.mxu0 0
        %1234 = vmatpush1.bf16.msra.mxu0 0
        %1235 = vmatprep.subr.bf16.mxu0 0
        %1236 = vmatpush1.bf16.msra.mxu0 0
        %1237 = vmatprep.subr.bf16.mxu0 0
        %1238 = vmatpush1.bf16.msra.mxu0 0
        %1239 = vmatprep.subr.bf16.mxu0 0
        %1240 = vmatpush1.bf16.msra.mxu0 0
        %1241 = vmatprep.subr.bf16.mxu0 0
        %1242 = vmatpush1.bf16.msra.mxu0 0
        %1243 = vmatprep.subr.bf16.mxu0 0
        %1244 = vmatpush1.bf16.msra.mxu0 0
        %1245 = vmatprep.subr.bf16.mxu0 0
        %1246 = vmatpush1.bf16.msra.mxu0 0
        %1247 = vmatprep.subr.bf16.mxu0 0
        %1248 = vmatpush1.bf16.msra.mxu0 0
        %1249 = vmatprep.mubr.bf16.mxu0 0
        %1250 = vmatmul.mubr.bf16.gmra.mrb[0].mxu0 %v1194
        %v1251 = vpop.f32.mrb[0].mxu0
        %v1252 = vadd.f32 %v1179, %v1251
        %v1253 = vpop.f32.mrb[0].mxu0
        %v1254 = vpop.f32.mrb[0].mxu0
        %v1255 = vadd.f32 %v1179, %v1254
        %v1256 = vpop.f32.mrb[0].mxu0
        %1257 = vmatprep.mubr.bf16.mxu0 0
        %1258 = vmatmul.mubr.bf16.gmra.mrb[0].mxu0 %v1197
        %v1259 = vpop.f32.mrb[0].mxu0
        %v1260 = vadd.f32 %v1179, %v1259
        %v1261 = vpop.f32.mrb[0].mxu0
        %v1262 = vpop.f32.mrb[0].mxu0
        %v1263 = vadd.f32 %v1179, %v1262
        %v1264 = vpop.f32.mrb[0].mxu0
        %1265 = vmatprep.mubr.bf16.mxu0 0
        %1266 = vmatmul.mubr.bf16.gmra.mrb[0].mxu0 %v1200
        %v1267 = vpop.f32.mrb[0].mxu0
        %v1268 = vadd.f32 %v1179, %v1267
        %v1269 = vpop.f32.mrb[0].mxu0
        %v1270 = vpop.f32.mrb[0].mxu0
        %v1271 = vadd.f32 %v1179, %v1270
        %v1272 = vpop.f32.mrb[0].mxu0
        %1273 = vmatprep.mubr.bf16.mxu0 0
        %1274 = vmatmul.mubr.bf16.gmra.mrb[0].mxu0 %v1203
        %v1275 = vpop.f32.mrb[0].mxu0
        %v1276 = vadd.f32 %v1179, %v1275
        %v1277 = vpop.f32.mrb[0].mxu0
        %v1278 = vpop.f32.mrb[0].mxu0
        %v1279 = vadd.f32 %v1179, %v1278
        %v1280 = vpop.f32.mrb[0].mxu0
        %1281 = vmatprep.mubr.bf16.mxu0 0
        %1282 = vmatmul.mubr.bf16.gmra.mrb[0].mxu0 %v1206
        %v1283 = vpop.f32.mrb[0].mxu0
        %v1284 = vadd.f32 %v1179, %v1283
        %v1285 = vpop.f32.mrb[0].mxu0
        %v1286 = vpop.f32.mrb[0].mxu0
        %v1287 = vadd.f32 %v1179, %v1286
        %v1288 = vpop.f32.mrb[0].mxu0
        %1289 = vmatprep.mubr.bf16.mxu0 0
        %1290 = vmatmul.mubr.bf16.gmra.mrb[0].mxu0 %v1209
        %v1291 = vpop.f32.mrb[0].mxu0
        %v1292 = vadd.f32 %v1179, %v1291
        %v1293 = vpop.f32.mrb[0].mxu0
        %v1294 = vpop.f32.mrb[0].mxu0
        %v1295 = vadd.f32 %v1179, %v1294
        %v1296 = vpop.f32.mrb[0].mxu0
        %1297 = vmatprep.mubr.bf16.mxu0 0
        %1298 = vmatmul.mubr.bf16.gmra.mrb[0].mxu0 %v1212
        %v1299 = vpop.f32.mrb[0].mxu0
        %v1300 = vadd.f32 %v1179, %v1299
        %v1301 = vpop.f32.mrb[0].mxu0
        %v1302 = vpop.f32.mrb[0].mxu0
        %v1303 = vadd.f32 %v1179, %v1302
        %v1304 = vpop.f32.mrb[0].mxu0
        %1305 = vmatprep.mubr.bf16.mxu0 0
        %1306 = vmatmul.mubr.bf16.gmra.mrb[0].mxu0 %v1215
        %v1307 = vpop.f32.mrb[0].mxu0
        %v1308 = vadd.f32 %v1179, %v1307
        %v1309 = vpop.f32.mrb[0].mxu0
        %v1310 = vpop.f32.mrb[0].mxu0
        %v1311 = vadd.f32 %v1179, %v1310
        %v1312 = vpop.f32.mrb[0].mxu0
        %1313 = vdwg.mxu0
        %v1314 = vand.u32 2147483647, %v1252
        %v1315 = vand.u32 2147483647, %v1255
        %v1316 = vand.u32 2147483647, %v1260
        %v1317 = vand.u32 2147483647, %v1263
        %v1318 = vand.u32 2147483647, %v1268
        %v1319 = vand.u32 2147483647, %v1271
        %v1320 = vand.u32 2147483647, %v1276
        %v1321 = vand.u32 2147483647, %v1279
        %v1322 = vand.u32 2147483647, %v1284
        %v1323 = vand.u32 2147483647, %v1287
        %v1324 = vand.u32 2147483647, %v1292
        %v1325 = vand.u32 2147483647, %v1295
        %v1326 = vand.u32 2147483647, %v1300
        %v1327 = vand.u32 2147483647, %v1303
        %v1328 = vand.u32 2147483647, %v1308
        %v1329 = vand.u32 2147483647, %v1311
        %v1330 = vadd.f32 %v1314, 1e-05
        %v1331 = vadd.f32 %v1315, 1e-05
        %v1332 = vadd.f32 %v1316, 1e-05
        %v1333 = vadd.f32 %v1317, 1e-05
        %v1334 = vadd.f32 %v1318, 1e-05
        %v1335 = vadd.f32 %v1319, 1e-05
        %v1336 = vadd.f32 %v1320, 1e-05
        %v1337 = vadd.f32 %v1321, 1e-05
        %v1338 = vadd.f32 %v1322, 1e-05
        %v1339 = vadd.f32 %v1323, 1e-05
        %v1340 = vadd.f32 %v1324, 1e-05
        %v1341 = vadd.f32 %v1325, 1e-05
        %v1342 = vadd.f32 %v1326, 1e-05
        %v1343 = vadd.f32 %v1327, 1e-05
        %v1344 = vadd.f32 %v1328, 1e-05
        %v1345 = vadd.f32 %v1329, 1e-05
        %v1346 = vsel %vm840, %v1330, 0.0
        %1347 = vadd.xlane.f32.xlu0 %v1346
        %v1348 = vpop.xlane.xlu0 %1347
        %v1349 = vsel %vm840, %v1331, 0.0
        %1350 = vadd.xlane.f32.xlu0 %v1349
        %v1351 = vpop.xlane.xlu0 %1350
        %v1352 = vsel %vm840, %v1332, 0.0
        %1353 = vadd.xlane.f32.xlu0 %v1352
        %v1354 = vpop.xlane.xlu0 %1353
        %v1355 = vsel %vm840, %v1333, 0.0
        %1356 = vadd.xlane.f32.xlu0 %v1355
        %v1357 = vpop.xlane.xlu0 %1356
        %v1358 = vsel %vm840, %v1334, 0.0
        %1359 = vadd.xlane.f32.xlu0 %v1358
        %v1360 = vpop.xlane.xlu0 %1359
        %v1361 = vsel %vm840, %v1335, 0.0
        %1362 = vadd.xlane.f32.xlu0 %v1361
        %v1363 = vpop.xlane.xlu0 %1362
        %v1364 = vsel %vm840, %v1336, 0.0
        %1365 = vadd.xlane.f32.xlu0 %v1364
        %v1366 = vpop.xlane.xlu0 %1365
        %v1367 = vsel %vm840, %v1337, 0.0
        %1368 = vadd.xlane.f32.xlu0 %v1367
        %v1369 = vpop.xlane.xlu0 %1368
        %v1370 = vsel %vm840, %v1338, 0.0
        %1371 = vadd.xlane.f32.xlu0 %v1370
        %v1372 = vpop.xlane.xlu0 %1371
        %v1373 = vsel %vm840, %v1339, 0.0
        %1374 = vadd.xlane.f32.xlu0 %v1373
        %v1375 = vpop.xlane.xlu0 %1374
        %v1376 = vsel %vm840, %v1340, 0.0
        %1377 = vadd.xlane.f32.xlu0 %v1376
        %v1378 = vpop.xlane.xlu0 %1377
        %v1379 = vsel %vm840, %v1341, 0.0
        %1380 = vadd.xlane.f32.xlu0 %v1379
        %v1381 = vpop.xlane.xlu0 %1380
        %v1382 = vsel %vm840, %v1342, 0.0
        %1383 = vadd.xlane.f32.xlu0 %v1382
        %v1384 = vpop.xlane.xlu0 %1383
        %v1385 = vsel %vm840, %v1343, 0.0
        %1386 = vadd.xlane.f32.xlu0 %v1385
        %v1387 = vpop.xlane.xlu0 %1386
        %v1388 = vsel %vm840, %v1344, 0.0
        %1389 = vadd.xlane.f32.xlu0 %v1388
        %v1390 = vpop.xlane.xlu0 %1389
        %v1391 = vsel %vm840, %v1345, 0.0
        %1392 = vadd.xlane.f32.xlu0 %v1391
        %v1393 = vpop.xlane.xlu0 %1392
        %v1394 = vrcp.pop %v1348
        %v1395 = vrcp.pop %v1351
        %v1396 = vrcp.pop %v1354
        %v1397 = vrcp.pop %v1357
        %v1398 = vrcp.pop %v1360
        %v1399 = vrcp.pop %v1363
        %v1400 = vrcp.pop %v1366
        %v1401 = vrcp.pop %v1369
        %v1402 = vrcp.pop %v1372
        %v1403 = vrcp.pop %v1375
        %v1404 = vrcp.pop %v1378
        %v1405 = vrcp.pop %v1381
        %v1406 = vrcp.pop %v1384
        %v1407 = vrcp.pop %v1387
        %v1408 = vrcp.pop %v1390
        %v1409 = vrcp.pop %v1393
        %v1410 = vmul.f32 %v1252, %v1394
        %v1411 = vmul.f32 %v1255, %v1395
        %v1412 = vmul.f32 %v1260, %v1396
        %v1413 = vmul.f32 %v1263, %v1397
        %v1414 = vmul.f32 %v1268, %v1398
        %v1415 = vmul.f32 %v1271, %v1399
        %v1416 = vmul.f32 %v1276, %v1400
        %v1417 = vmul.f32 %v1279, %v1401
        %v1418 = vmul.f32 %v1284, %v1402
        %v1419 = vmul.f32 %v1287, %v1403
        %v1420 = vmul.f32 %v1292, %v1404
        %v1421 = vmul.f32 %v1295, %v1405
        %v1422 = vmul.f32 %v1300, %v1406
        %v1423 = vmul.f32 %v1303, %v1407
        %v1424 = vmul.f32 %v1308, %v1408
        %v1425 = vmul.f32 %v1311, %v1409
        %1426 = vst.msk [vmem:[%s406] sm:$0xff] %vm840, %v1410
        %1427 = vst.msk [vmem:[%s406 + $0x8] sm:$0xff] %vm840, %v1411
        %1428 = vst.msk [vmem:[%s406 + $0x10] sm:$0xff] %vm840, %v1412
        %1429 = vst.msk [vmem:[%s406 + $0x18] sm:$0xff] %vm840, %v1413
        %1430 = vst.msk [vmem:[%s406 + $0x20] sm:$0xff] %vm840, %v1414
        %1431 = vst.msk [vmem:[%s406 + $0x28] sm:$0xff] %vm840, %v1415
        %1432 = vst.msk [vmem:[%s406 + $0x30] sm:$0xff] %vm840, %v1416
        %1433 = vst.msk [vmem:[%s406 + $0x38] sm:$0xff] %vm840, %v1417
        %1434 = vst.msk [vmem:[%s406 + $0x40] sm:$0xff] %vm840, %v1418
        %1435 = vst.msk [vmem:[%s406 + $0x48] sm:$0xff] %vm840, %v1419
        %1436 = vst.msk [vmem:[%s406 + $0x50] sm:$0xff] %vm840, %v1420
        %1437 = vst.msk [vmem:[%s406 + $0x58] sm:$0xff] %vm840, %v1421
        %1438 = vst.msk [vmem:[%s406 + $0x60] sm:$0xff] %vm840, %v1422
        %1439 = vst.msk [vmem:[%s406 + $0x68] sm:$0xff] %vm840, %v1423
        %1440 = vst.msk [vmem:[%s406 + $0x70] sm:$0xff] %vm840, %v1424
        %1441 = vst.msk [vmem:[%s406 + $0x78] sm:$0xff] %vm840, %v1425
        %1458 = vrot.lane.b32.xlu0 %v900, 32
        %v1459 = vpop.permute.xlu0 %1458
        %1460 = vrot.lane.b32.xlu0 %v903, 32
        %v1461 = vpop.permute.xlu0 %1460
        %1462 = vrot.lane.b32.xlu0 %v908, 32
        %v1463 = vpop.permute.xlu0 %1462
        %1464 = vrot.lane.b32.xlu0 %v911, 32
        %v1465 = vpop.permute.xlu0 %1464
        %1466 = vrot.lane.b32.xlu0 %v916, 32
        %v1467 = vpop.permute.xlu0 %1466
        %1468 = vrot.lane.b32.xlu0 %v919, 32
        %v1469 = vpop.permute.xlu0 %1468
        %1470 = vrot.lane.b32.xlu0 %v924, 32
        %v1471 = vpop.permute.xlu0 %1470
        %1472 = vrot.lane.b32.xlu0 %v927, 32
        %v1473 = vpop.permute.xlu0 %1472
        %1474 = vrot.lane.b32.xlu0 %v932, 32
        %v1475 = vpop.permute.xlu0 %1474
        %1476 = vrot.lane.b32.xlu0 %v935, 32
        %v1477 = vpop.permute.xlu0 %1476
        %1478 = vrot.lane.b32.xlu0 %v940, 32
        %v1479 = vpop.permute.xlu0 %1478
        %1480 = vrot.lane.b32.xlu0 %v943, 32
        %v1481 = vpop.permute.xlu0 %1480
        %1482 = vrot.lane.b32.xlu0 %v948, 32
        %v1483 = vpop.permute.xlu0 %1482
        %1484 = vrot.lane.b32.xlu0 %v951, 32
        %v1485 = vpop.permute.xlu0 %1484
        %1486 = vrot.lane.b32.xlu0 %v956, 32
        %v1487 = vpop.permute.xlu0 %1486
        %1488 = vrot.lane.b32.xlu0 %v959, 32
        %v1489 = vpop.permute.xlu0 %1488
        %v1506 = vadd.f32 %v468, %v1459
        %v1507 = vadd.f32 %v469, %v1461
        %v1508 = vadd.f32 %v470, %v1463
        %v1509 = vadd.f32 %v471, %v1465
        %v1510 = vadd.f32 %v472, %v1467
        %v1511 = vadd.f32 %v473, %v1469
        %v1512 = vadd.f32 %v474, %v1471
        %v1513 = vadd.f32 %v475, %v1473
        %v1514 = vadd.f32 %v476, %v1475
        %v1515 = vadd.f32 %v477, %v1477
        %v1516 = vadd.f32 %v478, %v1479
        %v1517 = vadd.f32 %v479, %v1481
        %v1518 = vadd.f32 %v480, %v1483
        %v1519 = vadd.f32 %v481, %v1485
        %v1520 = vadd.f32 %v482, %v1487
        %v1521 = vadd.f32 %v483, %v1489
        %1538 = vrot.lane.b32.xlu0 %v1506, 96
        %v1539 = vpop.permute.xlu0 %1538
        %1540 = vrot.lane.b32.xlu0 %v1507, 96
        %v1541 = vpop.permute.xlu0 %1540
        %1542 = vrot.lane.b32.xlu0 %v1508, 96
        %v1543 = vpop.permute.xlu0 %1542
        %1544 = vrot.lane.b32.xlu0 %v1509, 96
        %v1545 = vpop.permute.xlu0 %1544
        %1546 = vrot.lane.b32.xlu0 %v1510, 96
        %v1547 = vpop.permute.xlu0 %1546
        %1548 = vrot.lane.b32.xlu0 %v1511, 96
        %v1549 = vpop.permute.xlu0 %1548
        %1550 = vrot.lane.b32.xlu0 %v1512, 96
        %v1551 = vpop.permute.xlu0 %1550
        %1552 = vrot.lane.b32.xlu0 %v1513, 96
        %v1553 = vpop.permute.xlu0 %1552
        %1554 = vrot.lane.b32.xlu0 %v1514, 96
        %v1555 = vpop.permute.xlu0 %1554
        %1556 = vrot.lane.b32.xlu0 %v1515, 96
        %v1557 = vpop.permute.xlu0 %1556
        %1558 = vrot.lane.b32.xlu0 %v1516, 96
        %v1559 = vpop.permute.xlu0 %1558
        %1560 = vrot.lane.b32.xlu0 %v1517, 96
        %v1561 = vpop.permute.xlu0 %1560
        %1562 = vrot.lane.b32.xlu0 %v1518, 96
        %v1563 = vpop.permute.xlu0 %1562
        %1564 = vrot.lane.b32.xlu0 %v1519, 96
        %v1565 = vpop.permute.xlu0 %1564
        %1566 = vrot.lane.b32.xlu0 %v1520, 96
        %v1567 = vpop.permute.xlu0 %1566
        %1568 = vrot.lane.b32.xlu0 %v1521, 96
        %v1569 = vpop.permute.xlu0 %1568
        %v1586 = vmul.f32 %v1410, %v1539
        %v1587 = vmul.f32 %v1411, %v1541
        %v1588 = vmul.f32 %v1412, %v1543
        %v1589 = vmul.f32 %v1413, %v1545
        %v1590 = vmul.f32 %v1414, %v1547
        %v1591 = vmul.f32 %v1415, %v1549
        %v1592 = vmul.f32 %v1416, %v1551
        %v1593 = vmul.f32 %v1417, %v1553
        %v1594 = vmul.f32 %v1418, %v1555
        %v1595 = vmul.f32 %v1419, %v1557
        %v1596 = vmul.f32 %v1420, %v1559
        %v1597 = vmul.f32 %v1421, %v1561
        %v1598 = vmul.f32 %v1422, %v1563
        %v1599 = vmul.f32 %v1423, %v1565
        %v1600 = vmul.f32 %v1424, %v1567
        %v1601 = vmul.f32 %v1425, %v1569
        %v1602 = vsel %vm840, %v1586, 0.0
        %v1603 = vrot.slane %v1602, 4
        %v1604 = vadd.f32 %v1602, %v1603
        %v1605 = vrot.slane %v1604, 2
        %v1606 = vadd.f32 %v1604, %v1605
        %v1607 = vrot.slane %v1606, 1
        %v1608 = vadd.f32 %v1606, %v1607
        %v1609 = vsel %vm840, %v1587, 0.0
        %v1610 = vrot.slane %v1609, 4
        %v1611 = vadd.f32 %v1609, %v1610
        %v1612 = vrot.slane %v1611, 2
        %v1613 = vadd.f32 %v1611, %v1612
        %v1614 = vrot.slane %v1613, 1
        %v1615 = vadd.f32 %v1613, %v1614
        %v1616 = vsel %vm840, %v1588, 0.0
        %v1617 = vrot.slane %v1616, 4
        %v1618 = vadd.f32 %v1616, %v1617
        %v1619 = vrot.slane %v1618, 2
        %v1620 = vadd.f32 %v1618, %v1619
        %v1621 = vrot.slane %v1620, 1
        %v1622 = vadd.f32 %v1620, %v1621
        %v1623 = vsel %vm840, %v1589, 0.0
        %v1624 = vrot.slane %v1623, 4
        %v1625 = vadd.f32 %v1623, %v1624
        %v1626 = vrot.slane %v1625, 2
        %v1627 = vadd.f32 %v1625, %v1626
        %v1628 = vrot.slane %v1627, 1
        %v1629 = vadd.f32 %v1627, %v1628
        %v1630 = vsel %vm840, %v1590, 0.0
        %v1631 = vrot.slane %v1630, 4
        %v1632 = vadd.f32 %v1630, %v1631
        %v1633 = vrot.slane %v1632, 2
        %v1634 = vadd.f32 %v1632, %v1633
        %v1635 = vrot.slane %v1634, 1
        %v1636 = vadd.f32 %v1634, %v1635
        %v1637 = vsel %vm840, %v1591, 0.0
        %v1638 = vrot.slane %v1637, 4
        %v1639 = vadd.f32 %v1637, %v1638
        %v1640 = vrot.slane %v1639, 2
        %v1641 = vadd.f32 %v1639, %v1640
        %v1642 = vrot.slane %v1641, 1
        %v1643 = vadd.f32 %v1641, %v1642
        %v1644 = vsel %vm840, %v1592, 0.0
        %v1645 = vrot.slane %v1644, 4
        %v1646 = vadd.f32 %v1644, %v1645
        %v1647 = vrot.slane %v1646, 2
        %v1648 = vadd.f32 %v1646, %v1647
        %v1649 = vrot.slane %v1648, 1
        %v1650 = vadd.f32 %v1648, %v1649
        %v1651 = vsel %vm840, %v1593, 0.0
        %v1652 = vrot.slane %v1651, 4
        %v1653 = vadd.f32 %v1651, %v1652
        %v1654 = vrot.slane %v1653, 2
        %v1655 = vadd.f32 %v1653, %v1654
        %v1656 = vrot.slane %v1655, 1
        %v1657 = vadd.f32 %v1655, %v1656
        %v1658 = vsel %vm840, %v1594, 0.0
        %v1659 = vrot.slane %v1658, 4
        %v1660 = vadd.f32 %v1658, %v1659
        %v1661 = vrot.slane %v1660, 2
        %v1662 = vadd.f32 %v1660, %v1661
        %v1663 = vrot.slane %v1662, 1
        %v1664 = vadd.f32 %v1662, %v1663
        %v1665 = vsel %vm840, %v1595, 0.0
        %v1666 = vrot.slane %v1665, 4
        %v1667 = vadd.f32 %v1665, %v1666
        %v1668 = vrot.slane %v1667, 2
        %v1669 = vadd.f32 %v1667, %v1668
        %v1670 = vrot.slane %v1669, 1
        %v1671 = vadd.f32 %v1669, %v1670
        %v1672 = vsel %vm840, %v1596, 0.0
        %v1673 = vrot.slane %v1672, 4
        %v1674 = vadd.f32 %v1672, %v1673
        %v1675 = vrot.slane %v1674, 2
        %v1676 = vadd.f32 %v1674, %v1675
        %v1677 = vrot.slane %v1676, 1
        %v1678 = vadd.f32 %v1676, %v1677
        %v1679 = vsel %vm840, %v1597, 0.0
        %v1680 = vrot.slane %v1679, 4
        %v1681 = vadd.f32 %v1679, %v1680
        %v1682 = vrot.slane %v1681, 2
        %v1683 = vadd.f32 %v1681, %v1682
        %v1684 = vrot.slane %v1683, 1
        %v1685 = vadd.f32 %v1683, %v1684
        %v1686 = vsel %vm840, %v1598, 0.0
        %v1687 = vrot.slane %v1686, 4
        %v1688 = vadd.f32 %v1686, %v1687
        %v1689 = vrot.slane %v1688, 2
        %v1690 = vadd.f32 %v1688, %v1689
        %v1691 = vrot.slane %v1690, 1
        %v1692 = vadd.f32 %v1690, %v1691
        %v1693 = vsel %vm840, %v1599, 0.0
        %v1694 = vrot.slane %v1693, 4
        %v1695 = vadd.f32 %v1693, %v1694
        %v1696 = vrot.slane %v1695, 2
        %v1697 = vadd.f32 %v1695, %v1696
        %v1698 = vrot.slane %v1697, 1
        %v1699 = vadd.f32 %v1697, %v1698
        %v1700 = vsel %vm840, %v1600, 0.0
        %v1701 = vrot.slane %v1700, 4
        %v1702 = vadd.f32 %v1700, %v1701
        %v1703 = vrot.slane %v1702, 2
        %v1704 = vadd.f32 %v1702, %v1703
        %v1705 = vrot.slane %v1704, 1
        %v1706 = vadd.f32 %v1704, %v1705
        %v1707 = vsel %vm840, %v1601, 0.0
        %v1708 = vrot.slane %v1707, 4
        %v1709 = vadd.f32 %v1707, %v1708
        %v1710 = vrot.slane %v1709, 2
        %v1711 = vadd.f32 %v1709, %v1710
        %v1712 = vrot.slane %v1711, 1
        %v1713 = vadd.f32 %v1711, %v1712
        %vm1730 = vcmask 1041409
        %v1731 = vsel %vm1730, %v1615, %v1608
        %vm1732 = vcmask 1042434
        %v1733 = vsel %vm1732, %v1622, %v1731
        %vm1734 = vcmask 1043459
        %v1735 = vsel %vm1734, %v1629, %v1733
        %vm1736 = vcmask 1044484
        %v1737 = vsel %vm1736, %v1636, %v1735
        %vm1738 = vcmask 1045509
        %v1739 = vsel %vm1738, %v1643, %v1737
        %vm1740 = vcmask 1046534
        %v1741 = vsel %vm1740, %v1650, %v1739
        %vm1742 = vcmask 1047559
        %v1743 = vsel %vm1742, %v1657, %v1741
        %v1744 = vsel %vm1730, %v1671, %v1664
        %v1745 = vsel %vm1732, %v1678, %v1744
        %v1746 = vsel %vm1734, %v1685, %v1745
        %v1747 = vsel %vm1736, %v1692, %v1746
        %v1748 = vsel %vm1738, %v1699, %v1747
        %v1749 = vsel %vm1740, %v1706, %v1748
        %v1750 = vsel %vm1742, %v1713, %v1749
        %1753 = vst.msk [vmem:[%s447] sm:$0xff] %vm840, %v1743
        %1754 = vst.msk [vmem:[%s447 + $0x8] sm:$0xff] %vm840, %v1750
        %s1755 = sand.u32 %s250, 1
        %s1756 = scalar_lea.sflag [#allocation3], %s1755
        %s1757 = sand.u32 %s250, 1
        %s1758 = smul.addr %s1757, 128
        %s1759 = scalar_lea.vmem [#allocation2], %s1758
        %s1760 = smul.u32 2, %s30
        %p1761 = scmp.lt.s32.totalorder %s29, 1
        %s1762 = scalar_select %p1761, %s29, 1
        %p1763 = scmp.lt.s32.totalorder %s1760, 1
        %s1764 = scalar_select %p1763, %s1760, 1
        %s1765 = smul.addr %s1762, 2
        %s1766 = sadd.s32 %s1764, %s1765
        %s1767 = smul.addr %s1766, 8
        %s1768 = scalar_lea.vmem %s10, %s1767
        // Predicated region
        $region57: #{ctransformer_forward.4} parent=55 // pred_check
          %p1769 = pneg %p260
        $region58: #{ctransformer_forward.4} parent=55 // pred_check_branch
          %1771 = sbr.rel (%p1769) target = $region60
        $region59: #{ctransformer_forward.4} parent=55 // pred_region
          %s1772 = smul.u32 16, %s30
          %s1774 = ssub.s32 2048, 2048
          %1775 = vsyncadd %s1756, %s1774
          %s1776 = smul.addr %s29, 16
          %s1777 = sadd.s32 %s1772, %s1776
          %s1778 = smul.addr %s1777, 128
          %s1779 = scalar_lea.hbm %s9, %s1778
          %s1780 = sshll.u32 %s1759, 4
          %s1781 = int_to_ptr.vmem [resolvable:$true] %s1780
          %1786 = dma.vmem_to_hbm [thread:$0]  %s1781, 2048, %s1779, %s1756, 128, 128, 8
        $region60: #{ctransformer_forward.4} parent=55 // pred_fallthru
          _
        // Predicated region
        $region61: #{ctransformer_forward.4} parent=55 // pred_check
          %p1787 = pneg %p288
        $region62: #{ctransformer_forward.4} parent=55 // pred_check_branch
          %1789 = sbr.rel (%p1787) target = $region64
        $region63: #{ctransformer_forward.4} parent=55 // pred_region
          %s1790 = smul.u32 2, %s30
        $region64: #{ctransformer_forward.4} parent=55 // pred_fallthru
          _
      $region56: #{ctransformer_forward.4} parent=5 // pred_fallthru
        _
      %p1791 = scmp.le.s32.totalorder 2, %s20
      // Predicated region
      $region65: #{ctransformer_forward.4} parent=5 // pred_check
        %p1792 = pneg %p1791
      $region66: #{ctransformer_forward.4} parent=5 // pred_check_branch
        %1794 = sbr.rel (%p1792) target = $region68
      $region67: #{ctransformer_forward.4} parent=5 // pred_region
        %s1795 = ssub.s32 %s20, 2
        // Predicated region
        $region69: #{ctransformer_forward.4} parent=67 // pred_check
          %p1796 = pneg %p266
        $region70: #{ctransformer_forward.4} parent=67 // pred_check_branch
          %1798 = sbr.rel (%p1796) target = $region72
        $region71: #{ctransformer_forward.4} parent=67 // pred_region
          %s1799 = sand.u32 %s251, 1
          %s1800 = scalar_lea.sflag [#allocation3], %s1799
          %s1801 = sand.u32 %s251, 1
          %s1802 = smul.addr %s1801, 128
          %s1803 = scalar_lea.vmem [#allocation2], %s1802
          %1804 = dma.done %s1800, 2048
        $region72: #{ctransformer_forward.4} parent=67 // pred_fallthru
          _
        // Predicated region
        $region73: #{ctransformer_forward.4} parent=67 // pred_check
          %p1805 = pneg %p294
        $region74: #{ctransformer_forward.4} parent=67 // pred_check_branch
          %1807 = sbr.rel (%p1805) target = $region76
        $region75: #{ctransformer_forward.4} parent=67 // pred_region
          %s1808 = smul.u32 2, %s32
          %p1809 = scmp.lt.s32.totalorder %s31, 1
          %s1810 = scalar_select %p1809, %s31, 1
          %p1811 = scmp.lt.s32.totalorder %s1808, 1
          %s1812 = scalar_select %p1811, %s1808, 1
          %s1813 = smul.addr %s1810, 2
          %s1814 = sadd.s32 %s1812, %s1813
          %s1815 = smul.addr %s1814, 8
          %s1816 = scalar_lea.vmem %s10, %s1815
        $region76: #{ctransformer_forward.4} parent=67 // pred_fallthru
          _
      $region68: #{ctransformer_forward.4} parent=5 // pred_fallthru
        _
    $region6: #{ctransformer_forward.4} parent=1 // loop_footer
      %s24 = sadd.s32 1, %s20
    $region7: #{ctransformer_forward.4} parent=1 // loop_footer_branch
      %19 = sbr.rel target = $region3
    $region8: #{ctransformer_forward.4} parent=1 // loop_exit
      _
    %1817 = vsyncpa [#allocation3], 1
    %s1818 = scalar_lea.sflag [#allocation3], 1
    %1819 = vsyncpa %s1818, 1

</llo_original>
